<compile_context>
chip_gen: v7x
topology: tpu7x:2x2x1
jax: 0.10.0
libtpu: 0.0.40
codegen_flags: <defaults>
</compile_context>

<pallas_src>
import jax
import jax.numpy as jnp
from jax.experimental import pallas as pl
from jax.experimental.pallas import tpu as pltpu


# ---------------------------------------------------------------------------
# Pallas kernels
# ---------------------------------------------------------------------------
def _conv_pool_kernel(p_ref, w_ref, b_ref, o_ref):
    """Fused conv (as matmul) + bias + ReLU + 2x2 maxpool for one M tile.

    p_ref: (4, tile_m, Kpad) bf16 - im2col patches, one slab per pool-window
           position (dy,dx).  w_ref: (Kpad, 128) bf16.  b_ref: (1, 128) f32.
    pool(relu(z + b)) == relu(max_s(z_s) + b), so we keep one running f32
    max-accumulator across the four dots and apply bias+ReLU once.
    """
    w = w_ref[...]
    acc = jnp.dot(p_ref[0], w, preferred_element_type=jnp.float32)
    for s in range(1, 4):
        acc = jnp.maximum(
            acc, jnp.dot(p_ref[s], w, preferred_element_type=jnp.float32))
    o_ref[...] = jnp.maximum(acc + b_ref[...], 0.0).astype(o_ref.dtype)


def _fc_fused_kernel(x_ref, w1_ref, b1_ref, w2_ref, b2_ref, w3_ref, b3_ref,
                     o_ref):
    """fc1(ReLU) -> fc2(ReLU) -> fc3; intermediates never leave vregs/VMEM."""
    h = jnp.dot(x_ref[...], w1_ref[...], preferred_element_type=jnp.float32)
    h = jnp.maximum(h + b1_ref[...], 0.0)
    h = jnp.dot(h.astype(w2_ref.dtype), w2_ref[...],
                preferred_element_type=jnp.float32)
    h = jnp.maximum(h + b2_ref[...], 0.0)
    h = jnp.dot(h.astype(w3_ref.dtype), w3_ref[...],
                preferred_element_type=jnp.float32)
    o_ref[...] = (h + b3_ref[...]).astype(o_ref.dtype)


# ---------------------------------------------------------------------------
# Layer wrappers (layout glue in XLA, all compute in Pallas)
# ---------------------------------------------------------------------------
def _im2col_pooled(x, kh, kw, k_pad, tile_m):
    """One fused im2col producing a single stacked patch tensor.

    x: (N, H, W, C) NHWC.  Returns ((4, Mp_pad, k_pad) bf16, (N, ph, pw)),
    where slab s = 2*dy + dx holds the patches of conv outputs (2y+dy, 2x+dx)
    and rows are (n, y, x) pooled-output positions (zero-padded to Mp_pad).
    """
    N, H, W, C = x.shape
    oh, ow = H - kh + 1, W - kw + 1
    assert oh % 2 == 0 and ow % 2 == 0
    ph, pw = oh // 2, ow // 2
    k = kh * kw * C
    mp = N * ph * pw
    mp_pad = -(-mp // tile_m) * tile_m

    cols = [x[:, i:i + oh, j:j + ow, :] for i in range(kh) for j in range(kw)]
    p = jnp.stack(cols, axis=3)                       # (N, oh, ow, kh*kw, C)
    p = p.reshape(N, ph, 2, pw, 2, k)                 # split 2x2 pool windows
    p = p.transpose(2, 4, 0, 1, 3, 5)                 # (dy, dx, N, ph, pw, k)
    p = p.reshape(4, mp, k)
    p = jnp.pad(p, ((0, 0), (0, mp_pad - mp), (0, k_pad - k)))
    return p.astype(jnp.bfloat16), (N, ph, pw)


def conv_relu_pool(x_nhwc, w_pad, b_pad, *, kh=5, kw=5, tile_m=56):
    """Fused conv(valid, stride 1) + ReLU + 2x2 maxpool.  -> (N, ph, pw, 128)."""
    k_pad, cout = w_pad.shape
    patches, (N, ph, pw) = _im2col_pooled(x_nhwc, kh, kw, k_pad, tile_m)
    mp_pad = patches.shape[1]
    grid_m = mp_pad // tile_m

    out = pl.pallas_call(
        _conv_pool_kernel,
        grid=(grid_m,),
        out_shape=jax.ShapeDtypeStruct((mp_pad, cout), jnp.bfloat16),
        in_specs=[
            pl.BlockSpec((4, tile_m, k_pad), lambda i: (0, i, 0)),
            pl.BlockSpec((k_pad, cout), lambda i: (0, 0)),   # VMEM-resident
            pl.BlockSpec((1, cout), lambda i: (0, 0)),       # VMEM-resident
        ],
        out_specs=pl.BlockSpec((tile_m, cout), lambda i: (i, 0)),
        compiler_params=pltpu.CompilerParams(
            dimension_semantics=("parallel",)),
    )(patches, w_pad, b_pad)

    mp = N * ph * pw
    return out[:mp].reshape(N, ph, pw, cout)


def fc_fused(x_flat, q):
    """x_flat: (N, 400) activations (NHWC flatten).  Returns (N, 10) f32."""
    N, k = x_flat.shape
    n_pad = max(8, -(-N // 8) * 8)                    # sublane-multiple rows
    x_pad = jnp.pad(x_flat, ((0, n_pad - N), (0, 512 - k))).astype(jnp.bfloat16)

    def spec(shape):
        return pl.BlockSpec(shape, lambda i: (0, 0))

    out = pl.pallas_call(
        _fc_fused_kernel,
        grid=(1,),
        out_shape=jax.ShapeDtypeStruct((n_pad, 128), jnp.float32),
        in_specs=[spec((n_pad, 512)),
                  spec((512, 128)), spec((1, 128)),
                  spec((128, 128)), spec((1, 128)),
                  spec((128, 128)), spec((1, 128))],
        out_specs=spec((n_pad, 128)),
        compiler_params=pltpu.CompilerParams(
            dimension_semantics=("arbitrary",)),
    )(x_pad, q["fc1_w"], q["fc1_b"], q["fc2_w"], q["fc2_b"],
      q["fc3_w"], q["fc3_b"])
    return out[:N, :10]


def net_forward(x_nchw, q):
    N = x_nchw.shape[0]
    x = jnp.transpose(x_nchw, (0, 2, 3, 1)).astype(jnp.bfloat16)      # NHWC
    x = conv_relu_pool(x, q["conv1_w"], q["conv1_b"], tile_m=56)      # (N,14,14,128)
    # Carry 8 channels (6 real + 2 exact zeros) so lane/sublane packing of the
    # conv2 im2col stays clean; conv2_w has its Cin dim zero-padded to 8.
    x = x[:, :, :, :8]
    x = conv_relu_pool(x, q["conv2_w"], q["conv2_b"], tile_m=56)      # (N,5,5,128)
    x = x[:, :, :, :16].reshape(N, 400)   # NHWC-flatten (y,x,c); fc1 cols permuted
    return fc_fused(x, q)                                             # (N,10) f32


# ---------------------------------------------------------------------------
# One-time parameter preparation (outside jit): transpose / permute / pad / cast
# ---------------------------------------------------------------------------
def prepare_params(p):
    def pad2(a, rows, cols):
        return jnp.pad(a, ((0, rows - a.shape[0]), (0, cols - a.shape[1])))

    def padb(b, cols):
        return jnp.pad(b, (0, cols - b.shape[0])).reshape(1, cols).astype(jnp.float32)

    q = {}
    # conv1: OIHW -> ((i*kw+j)*Cin + c, Cout); K 75->128, Cout 6->128.
    w1 = jnp.transpose(p["conv1_w"], (2, 3, 1, 0)).reshape(5 * 5 * 3, 6)
    q["conv1_w"] = pad2(w1, 128, 128).astype(jnp.bfloat16)
    q["conv1_b"] = padb(p["conv1_b"], 128)
    # conv2: OIHW -> (kh,kw,Cin,Cout), Cin zero-padded 6->8, then flattened;
    # K = 25*8 = 200 -> 256, Cout 16 -> 128.
    w2 = jnp.transpose(p["conv2_w"], (2, 3, 1, 0))              # (5,5,6,16)
    w2 = jnp.pad(w2, ((0, 0), (0, 0), (0, 2), (0, 0)))          # (5,5,8,16)
    w2 = w2.reshape(5 * 5 * 8, 16)
    q["conv2_w"] = pad2(w2, 256, 128).astype(jnp.bfloat16)
    q["conv2_b"] = padb(p["conv2_b"], 128)
    # fc1: permute input-feature columns from torch NCHW-flatten (c,y,x) to our
    # NHWC-flatten (y,x,c), then transpose and zero-pad to (512, 128).
    f1 = p["fc1_w"].reshape(120, 16, 5, 5).transpose(2, 3, 1, 0).reshape(400, 120)
    q["fc1_w"] = pad2(f1, 512, 128).astype(jnp.bfloat16)
    q["fc1_b"] = padb(p["fc1_b"], 128)
    q["fc2_w"] = pad2(p["fc2_w"].T, 128, 128).astype(jnp.bfloat16)
    q["fc2_b"] = padb(p["fc2_b"], 128)
    q["fc3_w"] = pad2(p["fc3_w"].T, 128, 128).astype(jnp.bfloat16)
    q["fc3_b"] = padb(p["fc3_b"], 128)
    return q


# ---------------------------------------------------------------------------
# Deterministic parameter init (PyTorch-default-like uniform +-1/sqrt(fan_in))
# ---------------------------------------------------------------------------
def init_params(key):
    def uniform(key, shape, fan_in):
        bound = 1.0 / jnp.sqrt(fan_in)
        return jax.random.uniform(key, shape, jnp.float32, -bound, bound)

    ks = jax.random.split(key, 10)
    p = {}
    p["conv1_w"] = uniform(ks[0], (6, 3, 5, 5), 3 * 5 * 5)
    p["conv1_b"] = uniform(ks[1], (6,), 3 * 5 * 5)
    p["conv2_w"] = uniform(ks[2], (16, 6, 5, 5), 6 * 5 * 5)
    p["conv2_b"] = uniform(ks[3], (16,), 6 * 5 * 5)
    p["fc1_w"] = uniform(ks[4], (120, 16 * 5 * 5), 16 * 5 * 5)
    p["fc1_b"] = uniform(ks[5], (120,), 16 * 5 * 5)
    p["fc2_w"] = uniform(ks[6], (84, 120), 120)
    p["fc2_b"] = uniform(ks[7], (84,), 120)
    p["fc3_w"] = uniform(ks[8], (10, 84), 84)
    p["fc3_b"] = uniform(ks[9], (10,), 84)
    return p


if __name__ == "__main__":
    key = jax.random.PRNGKey(0)
    pkey, xkey = jax.random.split(key)
    params = init_params(pkey)
    prepped = prepare_params(params)          # one-time weight prep, outside jit
    # fc1 expects 16*5*5 features => input spatial size must be 32x32 (NCHW).
    x = jax.random.normal(xkey, (2, 3, 32, 32), dtype=jnp.float32)

    out = jax.jit(net_forward)(x, prepped)
    out = jax.block_until_ready(out)
    assert out.shape == (2, 10), out.shape
    assert out.dtype == jnp.float32
    print("KERNEL_OK")
</pallas_src>

<mosaic_0001>
module attributes {stable_mosaic.version = 11 : i64} {
  func.func @_conv_pool_kernel(%arg0: i32, %arg1: memref<4x56x128xbf16, #tpu.memory_space<vmem>>, %arg2: memref<128x128xbf16, #tpu.memory_space<vmem>>, %arg3: memref<1x128xf32, #tpu.memory_space<vmem>>, %arg4: memref<56x128xbf16, #tpu.memory_space<vmem>>) attributes {dimension_semantics = [#tpu.dimension_semantics<parallel>], iteration_bounds = array<i64: 7>, scalar_prefetch = 0 : i64, scratch_operands = 0 : i64, tpu.core_type = #tpu.core_type<tc>, window_params = [{transform_indices = @transform_0, window_bounds = array<i64: 4, 56, 128>}, {pipeline_mode = #tpu.pipeline_mode<synchronous>, transform_indices = @transform_1, window_bounds = array<i64: 128, 128>}, {pipeline_mode = #tpu.pipeline_mode<synchronous>, transform_indices = @transform_2, window_bounds = array<i64: 1, 128>}, {transform_indices = @transform_3, window_bounds = array<i64: 56, 128>}]} {
    %c0 = arith.constant 0 : index
    %c0_0 = arith.constant 0 : index
    %0 = vector.load %arg2[%c0, %c0_0] : memref<128x128xbf16, #tpu.memory_space<vmem>>, vector<128x128xbf16>
    %c0_1 = arith.constant 0 : index
    %c0_2 = arith.constant 0 : index
    %c0_3 = arith.constant 0 : index
    %1 = vector.load %arg1[%c0_1, %c0_2, %c0_3] : memref<4x56x128xbf16, #tpu.memory_space<vmem>>, vector<1x56x128xbf16>
    %2 = vector.shape_cast %1 : vector<1x56x128xbf16> to vector<56x128xbf16>
    %cst = arith.constant dense<0.000000e+00> : vector<56x128xf32>
    %3 = tpu.matmul %2, %0, %cst {dimension_numbers = #tpu.dot_dimension_numbers<[1], [0], [0], [1], [0, 0, 1, 1], [], []>} : vector<56x128xbf16>, vector<128x128xbf16>, vector<56x128xf32> -> vector<56x128xf32>
    %c1 = arith.constant 1 : index
    %c0_4 = arith.constant 0 : index
    %c0_5 = arith.constant 0 : index
    %4 = vector.load %arg1[%c1, %c0_4, %c0_5] : memref<4x56x128xbf16, #tpu.memory_space<vmem>>, vector<1x56x128xbf16>
    %5 = vector.shape_cast %4 : vector<1x56x128xbf16> to vector<56x128xbf16>
    %cst_6 = arith.constant dense<0.000000e+00> : vector<56x128xf32>
    %6 = tpu.matmul %5, %0, %cst_6 {dimension_numbers = #tpu.dot_dimension_numbers<[1], [0], [0], [1], [0, 0, 1, 1], [], []>} : vector<56x128xbf16>, vector<128x128xbf16>, vector<56x128xf32> -> vector<56x128xf32>
    %7 = arith.maximumf %3, %6 : vector<56x128xf32>
    %c2 = arith.constant 2 : index
    %c0_7 = arith.constant 0 : index
    %c0_8 = arith.constant 0 : index
    %8 = vector.load %arg1[%c2, %c0_7, %c0_8] : memref<4x56x128xbf16, #tpu.memory_space<vmem>>, vector<1x56x128xbf16>
    %9 = vector.shape_cast %8 : vector<1x56x128xbf16> to vector<56x128xbf16>
    %cst_9 = arith.constant dense<0.000000e+00> : vector<56x128xf32>
    %10 = tpu.matmul %9, %0, %cst_9 {dimension_numbers = #tpu.dot_dimension_numbers<[1], [0], [0], [1], [0, 0, 1, 1], [], []>} : vector<56x128xbf16>, vector<128x128xbf16>, vector<56x128xf32> -> vector<56x128xf32>
    %11 = arith.maximumf %7, %10 : vector<56x128xf32>
    %c3 = arith.constant 3 : index
    %c0_10 = arith.constant 0 : index
    %c0_11 = arith.constant 0 : index
    %12 = vector.load %arg1[%c3, %c0_10, %c0_11] : memref<4x56x128xbf16, #tpu.memory_space<vmem>>, vector<1x56x128xbf16>
    %13 = vector.shape_cast %12 : vector<1x56x128xbf16> to vector<56x128xbf16>
    %cst_12 = arith.constant dense<0.000000e+00> : vector<56x128xf32>
    %14 = tpu.matmul %13, %0, %cst_12 {dimension_numbers = #tpu.dot_dimension_numbers<[1], [0], [0], [1], [0, 0, 1, 1], [], []>} : vector<56x128xbf16>, vector<128x128xbf16>, vector<56x128xf32> -> vector<56x128xf32>
    %15 = arith.maximumf %11, %14 : vector<56x128xf32>
    %c0_13 = arith.constant 0 : index
    %c0_14 = arith.constant 0 : index
    %16 = vector.load %arg3[%c0_13, %c0_14] : memref<1x128xf32, #tpu.memory_space<vmem>>, vector<1x128xf32>
    %17 = vector.broadcast %16 : vector<1x128xf32> to vector<56x128xf32>
    %18 = arith.addf %15, %17 : vector<56x128xf32>
    %cst_15 = arith.constant 0.000000e+00 : f32
    %19 = vector.broadcast %cst_15 : f32 to vector<56x128xf32>
    %20 = arith.maximumf %18, %19 : vector<56x128xf32>
    %21 = arith.truncf %20 : vector<56x128xf32> to vector<56x128xbf16>
    %c0_16 = arith.constant 0 : index
    %c0_17 = arith.constant 0 : index
    %22 = vector.load %arg4[%c0_16, %c0_17] : memref<56x128xbf16, #tpu.memory_space<vmem>>, vector<56x128xbf16>
    tpu.vector_store %arg4[%c0_16, %c0_17], %21 {strides = array<i32>} : memref<56x128xbf16, #tpu.memory_space<vmem>>, vector<56x128xbf16>,
    return
  }
  func.func @transform_0(%arg0: i32) -> (i32, i32, i32) {
    %c0_i32 = arith.constant 0 : i32
    %c0_i32_0 = arith.constant 0 : i32
    %c0_i32_1 = arith.constant 0 : i32
    return %c0_i32, %arg0, %c0_i32_0 : i32, i32, i32
  }
  func.func @transform_1(%arg0: i32) -> (i32, i32) {
    %c0_i32 = arith.constant 0 : i32
    %c0_i32_0 = arith.constant 0 : i32
    %c0_i32_1 = arith.constant 0 : i32
    return %c0_i32, %c0_i32_0 : i32, i32
  }
  func.func @transform_2(%arg0: i32) -> (i32, i32) {
    %c0_i32 = arith.constant 0 : i32
    %c0_i32_0 = arith.constant 0 : i32
    %c0_i32_1 = arith.constant 0 : i32
    return %c0_i32, %c0_i32_0 : i32, i32
  }
  func.func @transform_3(%arg0: i32) -> (i32, i32) {
    %c0_i32 = arith.constant 0 : i32
    %c0_i32_0 = arith.constant 0 : i32
    return %arg0, %c0_i32 : i32, i32
  }
}

module attributes {stable_mosaic.version = 11 : i64} {
  func.func @_conv_pool_kernel(%arg0: i32, %arg1: memref<4x56x256xbf16, #tpu.memory_space<vmem>>, %arg2: memref<256x128xbf16, #tpu.memory_space<vmem>>, %arg3: memref<1x128xf32, #tpu.memory_space<vmem>>, %arg4: memref<56x128xbf16, #tpu.memory_space<vmem>>) attributes {dimension_semantics = [#tpu.dimension_semantics<parallel>], iteration_bounds = array<i64: 1>, scalar_prefetch = 0 : i64, scratch_operands = 0 : i64, tpu.core_type = #tpu.core_type<tc>, window_params = [{transform_indices = @transform_0, window_bounds = array<i64: 4, 56, 256>}, {pipeline_mode = #tpu.pipeline_mode<synchronous>, transform_indices = @transform_1, window_bounds = array<i64: 256, 128>}, {pipeline_mode = #tpu.pipeline_mode<synchronous>, transform_indices = @transform_2, window_bounds = array<i64: 1, 128>}, {transform_indices = @transform_3, window_bounds = array<i64: 56, 128>}]} {
    %c0 = arith.constant 0 : index
    %c0_0 = arith.constant 0 : index
    %0 = vector.load %arg2[%c0, %c0_0] : memref<256x128xbf16, #tpu.memory_space<vmem>>, vector<256x128xbf16>
    %c0_1 = arith.constant 0 : index
    %c0_2 = arith.constant 0 : index
    %c0_3 = arith.constant 0 : index
    %1 = vector.load %arg1[%c0_1, %c0_2, %c0_3] : memref<4x56x256xbf16, #tpu.memory_space<vmem>>, vector<1x56x256xbf16>
    %2 = vector.shape_cast %1 : vector<1x56x256xbf16> to vector<56x256xbf16>
    %cst = arith.constant dense<0.000000e+00> : vector<56x128xf32>
    %3 = tpu.matmul %2, %0, %cst {dimension_numbers = #tpu.dot_dimension_numbers<[1], [0], [0], [1], [0, 0, 1, 1], [], []>} : vector<56x256xbf16>, vector<256x128xbf16>, vector<56x128xf32> -> vector<56x128xf32>
    %c1 = arith.constant 1 : index
    %c0_4 = arith.constant 0 : index
    %c0_5 = arith.constant 0 : index
    %4 = vector.load %arg1[%c1, %c0_4, %c0_5] : memref<4x56x256xbf16, #tpu.memory_space<vmem>>, vector<1x56x256xbf16>
    %5 = vector.shape_cast %4 : vector<1x56x256xbf16> to vector<56x256xbf16>
    %cst_6 = arith.constant dense<0.000000e+00> : vector<56x128xf32>
    %6 = tpu.matmul %5, %0, %cst_6 {dimension_numbers = #tpu.dot_dimension_numbers<[1], [0], [0], [1], [0, 0, 1, 1], [], []>} : vector<56x256xbf16>, vector<256x128xbf16>, vector<56x128xf32> -> vector<56x128xf32>
    %7 = arith.maximumf %3, %6 : vector<56x128xf32>
    %c2 = arith.constant 2 : index
    %c0_7 = arith.constant 0 : index
    %c0_8 = arith.constant 0 : index
    %8 = vector.load %arg1[%c2, %c0_7, %c0_8] : memref<4x56x256xbf16, #tpu.memory_space<vmem>>, vector<1x56x256xbf16>
    %9 = vector.shape_cast %8 : vector<1x56x256xbf16> to vector<56x256xbf16>
    %cst_9 = arith.constant dense<0.000000e+00> : vector<56x128xf32>
    %10 = tpu.matmul %9, %0, %cst_9 {dimension_numbers = #tpu.dot_dimension_numbers<[1], [0], [0], [1], [0, 0, 1, 1], [], []>} : vector<56x256xbf16>, vector<256x128xbf16>, vector<56x128xf32> -> vector<56x128xf32>
    %11 = arith.maximumf %7, %10 : vector<56x128xf32>
    %c3 = arith.constant 3 : index
    %c0_10 = arith.constant 0 : index
    %c0_11 = arith.constant 0 : index
    %12 = vector.load %arg1[%c3, %c0_10, %c0_11] : memref<4x56x256xbf16, #tpu.memory_space<vmem>>, vector<1x56x256xbf16>
    %13 = vector.shape_cast %12 : vector<1x56x256xbf16> to vector<56x256xbf16>
    %cst_12 = arith.constant dense<0.000000e+00> : vector<56x128xf32>
    %14 = tpu.matmul %13, %0, %cst_12 {dimension_numbers = #tpu.dot_dimension_numbers<[1], [0], [0], [1], [0, 0, 1, 1], [], []>} : vector<56x256xbf16>, vector<256x128xbf16>, vector<56x128xf32> -> vector<56x128xf32>
    %15 = arith.maximumf %11, %14 : vector<56x128xf32>
    %c0_13 = arith.constant 0 : index
    %c0_14 = arith.constant 0 : index
    %16 = vector.load %arg3[%c0_13, %c0_14] : memref<1x128xf32, #tpu.memory_space<vmem>>, vector<1x128xf32>
    %17 = vector.broadcast %16 : vector<1x128xf32> to vector<56x128xf32>
    %18 = arith.addf %15, %17 : vector<56x128xf32>
    %cst_15 = arith.constant 0.000000e+00 : f32
    %19 = vector.broadcast %cst_15 : f32 to vector<56x128xf32>
    %20 = arith.maximumf %18, %19 : vector<56x128xf32>
    %21 = arith.truncf %20 : vector<56x128xf32> to vector<56x128xbf16>
    %c0_16 = arith.constant 0 : index
    %c0_17 = arith.constant 0 : index
    %22 = vector.load %arg4[%c0_16, %c0_17] : memref<56x128xbf16, #tpu.memory_space<vmem>>, vector<56x128xbf16>
    tpu.vector_store %arg4[%c0_16, %c0_17], %21 {strides = array<i32>} : memref<56x128xbf16, #tpu.memory_space<vmem>>, vector<56x128xbf16>,
    return
  }
  func.func @transform_0(%arg0: i32) -> (i32, i32, i32) {
    %c0_i32 = arith.constant 0 : i32
    %c0_i32_0 = arith.constant 0 : i32
    %c0_i32_1 = arith.constant 0 : i32
    return %c0_i32, %arg0, %c0_i32_0 : i32, i32, i32
  }
  func.func @transform_1(%arg0: i32) -> (i32, i32) {
    %c0_i32 = arith.constant 0 : i32
    %c0_i32_0 = arith.constant 0 : i32
    %c0_i32_1 = arith.constant 0 : i32
    return %c0_i32, %c0_i32_0 : i32, i32
  }
  func.func @transform_2(%arg0: i32) -> (i32, i32) {
    %c0_i32 = arith.constant 0 : i32
    %c0_i32_0 = arith.constant 0 : i32
    %c0_i32_1 = arith.constant 0 : i32
    return %c0_i32, %c0_i32_0 : i32, i32
  }
  func.func @transform_3(%arg0: i32) -> (i32, i32) {
    %c0_i32 = arith.constant 0 : i32
    %c0_i32_0 = arith.constant 0 : i32
    return %arg0, %c0_i32 : i32, i32
  }
}

module attributes {stable_mosaic.version = 11 : i64} {
  func.func @_fc_fused_kernel(%arg0: i32, %arg1: memref<8x512xbf16, #tpu.memory_space<vmem>>, %arg2: memref<512x128xbf16, #tpu.memory_space<vmem>>, %arg3: memref<1x128xf32, #tpu.memory_space<vmem>>, %arg4: memref<128x128xbf16, #tpu.memory_space<vmem>>, %arg5: memref<1x128xf32, #tpu.memory_space<vmem>>, %arg6: memref<128x128xbf16, #tpu.memory_space<vmem>>, %arg7: memref<1x128xf32, #tpu.memory_space<vmem>>, %arg8: memref<8x128xf32, #tpu.memory_space<vmem>>) attributes {dimension_semantics = [#tpu.dimension_semantics<arbitrary>], iteration_bounds = array<i64: 1>, scalar_prefetch = 0 : i64, scratch_operands = 0 : i64, tpu.core_type = #tpu.core_type<tc>, window_params = [{pipeline_mode = #tpu.pipeline_mode<synchronous>, transform_indices = @transform_0, window_bounds = array<i64: 8, 512>}, {pipeline_mode = #tpu.pipeline_mode<synchronous>, transform_indices = @transform_1, window_bounds = array<i64: 512, 128>}, {pipeline_mode = #tpu.pipeline_mode<synchronous>, transform_indices = @transform_2, window_bounds = array<i64: 1, 128>}, {pipeline_mode = #tpu.pipeline_mode<synchronous>, transform_indices = @transform_3, window_bounds = array<i64: 128, 128>}, {pipeline_mode = #tpu.pipeline_mode<synchronous>, transform_indices = @transform_4, window_bounds = array<i64: 1, 128>}, {pipeline_mode = #tpu.pipeline_mode<synchronous>, transform_indices = @transform_5, window_bounds = array<i64: 128, 128>}, {pipeline_mode = #tpu.pipeline_mode<synchronous>, transform_indices = @transform_6, window_bounds = array<i64: 1, 128>}, {pipeline_mode = #tpu.pipeline_mode<synchronous>, transform_indices = @transform_7, window_bounds = array<i64: 8, 128>}]} {
    %c0 = arith.constant 0 : index
    %c0_0 = arith.constant 0 : index
    %0 = vector.load %arg1[%c0, %c0_0] : memref<8x512xbf16, #tpu.memory_space<vmem>>, vector<8x512xbf16>
    %c0_1 = arith.constant 0 : index
    %c0_2 = arith.constant 0 : index
    %1 = vector.load %arg2[%c0_1, %c0_2] : memref<512x128xbf16, #tpu.memory_space<vmem>>, vector<512x128xbf16>
    %cst = arith.constant dense<0.000000e+00> : vector<8x128xf32>
    %2 = tpu.matmul %0, %1, %cst {dimension_numbers = #tpu.dot_dimension_numbers<[1], [0], [0], [1], [0, 0, 1, 1], [], []>} : vector<8x512xbf16>, vector<512x128xbf16>, vector<8x128xf32> -> vector<8x128xf32>
    %c0_3 = arith.constant 0 : index
    %c0_4 = arith.constant 0 : index
    %3 = vector.load %arg3[%c0_3, %c0_4] : memref<1x128xf32, #tpu.memory_space<vmem>>, vector<1x128xf32>
    %4 = vector.broadcast %3 : vector<1x128xf32> to vector<8x128xf32>
    %5 = arith.addf %2, %4 : vector<8x128xf32>
    %cst_5 = arith.constant 0.000000e+00 : f32
    %6 = vector.broadcast %cst_5 : f32 to vector<8x128xf32>
    %7 = arith.maximumf %5, %6 : vector<8x128xf32>
    %8 = arith.truncf %7 : vector<8x128xf32> to vector<8x128xbf16>
    %c0_6 = arith.constant 0 : index
    %c0_7 = arith.constant 0 : index
    %9 = vector.load %arg4[%c0_6, %c0_7] : memref<128x128xbf16, #tpu.memory_space<vmem>>, vector<128x128xbf16>
    %cst_8 = arith.constant dense<0.000000e+00> : vector<8x128xf32>
    %10 = tpu.matmul %8, %9, %cst_8 {dimension_numbers = #tpu.dot_dimension_numbers<[1], [0], [0], [1], [0, 0, 1, 1], [], []>} : vector<8x128xbf16>, vector<128x128xbf16>, vector<8x128xf32> -> vector<8x128xf32>
    %c0_9 = arith.constant 0 : index
    %c0_10 = arith.constant 0 : index
    %11 = vector.load %arg5[%c0_9, %c0_10] : memref<1x128xf32, #tpu.memory_space<vmem>>, vector<1x128xf32>
    %12 = vector.broadcast %11 : vector<1x128xf32> to vector<8x128xf32>
    %13 = arith.addf %10, %12 : vector<8x128xf32>
    %cst_11 = arith.constant 0.000000e+00 : f32
    %14 = vector.broadcast %cst_11 : f32 to vector<8x128xf32>
    %15 = arith.maximumf %13, %14 : vector<8x128xf32>
    %16 = arith.truncf %15 : vector<8x128xf32> to vector<8x128xbf16>
    %c0_12 = arith.constant 0 : index
    %c0_13 = arith.constant 0 : index
    %17 = vector.load %arg6[%c0_12, %c0_13] : memref<128x128xbf16, #tpu.memory_space<vmem>>, vector<128x128xbf16>
    %cst_14 = arith.constant dense<0.000000e+00> : vector<8x128xf32>
    %18 = tpu.matmul %16, %17, %cst_14 {dimension_numbers = #tpu.dot_dimension_numbers<[1], [0], [0], [1], [0, 0, 1, 1], [], []>} : vector<8x128xbf16>, vector<128x128xbf16>, vector<8x128xf32> -> vector<8x128xf32>
    %c0_15 = arith.constant 0 : index
    %c0_16 = arith.constant 0 : index
    %19 = vector.load %arg7[%c0_15, %c0_16] : memref<1x128xf32, #tpu.memory_space<vmem>>, vector<1x128xf32>
    %20 = vector.broadcast %19 : vector<1x128xf32> to vector<8x128xf32>
    %21 = arith.addf %18, %20 : vector<8x128xf32>
    %c0_17 = arith.constant 0 : index
    %c0_18 = arith.constant 0 : index
    %22 = vector.load %arg8[%c0_17, %c0_18] : memref<8x128xf32, #tpu.memory_space<vmem>>, vector<8x128xf32>
    tpu.vector_store %arg8[%c0_17, %c0_18], %21 {strides = array<i32>} : memref<8x128xf32, #tpu.memory_space<vmem>>, vector<8x128xf32>,
    return
  }
  func.func @transform_0(%arg0: i32) -> (i32, i32) {
    %c0_i32 = arith.constant 0 : i32
    %c0_i32_0 = arith.constant 0 : i32
    %c0_i32_1 = arith.constant 0 : i32
    return %c0_i32, %c0_i32_0 : i32, i32
  }
  func.func @transform_1(%arg0: i32) -> (i32, i32) {
    %c0_i32 = arith.constant 0 : i32
    %c0_i32_0 = arith.constant 0 : i32
    %c0_i32_1 = arith.constant 0 : i32
    return %c0_i32, %c0_i32_0 : i32, i32
  }
  func.func @transform_2(%arg0: i32) -> (i32, i32) {
    %c0_i32 = arith.constant 0 : i32
    %c0_i32_0 = arith.constant 0 : i32
    %c0_i32_1 = arith.constant 0 : i32
    return %c0_i32, %c0_i32_0 : i32, i32
  }
  func.func @transform_3(%arg0: i32) -> (i32, i32) {
    %c0_i32 = arith.constant 0 : i32
    %c0_i32_0 = arith.constant 0 : i32
    %c0_i32_1 = arith.constant 0 : i32
    return %c0_i32, %c0_i32_0 : i32, i32
  }
  func.func @transform_4(%arg0: i32) -> (i32, i32) {
    %c0_i32 = arith.constant 0 : i32
    %c0_i32_0 = arith.constant 0 : i32
    %c0_i32_1 = arith.constant 0 : i32
    return %c0_i32, %c0_i32_0 : i32, i32
  }
  func.func @transform_5(%arg0: i32) -> (i32, i32) {
    %c0_i32 = arith.constant 0 : i32
    %c0_i32_0 = arith.constant 0 : i32
    %c0_i32_1 = arith.constant 0 : i32
    return %c0_i32, %c0_i32_0 : i32, i32
  }
  func.func @transform_6(%arg0: i32) -> (i32, i32) {
    %c0_i32 = arith.constant 0 : i32
    %c0_i32_0 = arith.constant 0 : i32
    %c0_i32_1 = arith.constant 0 : i32
    return %c0_i32, %c0_i32_0 : i32, i32
  }
  func.func @transform_7(%arg0: i32) -> (i32, i32) {
    %c0_i32 = arith.constant 0 : i32
    %c0_i32_0 = arith.constant 0 : i32
    %c0_i32_1 = arith.constant 0 : i32
    return %c0_i32, %c0_i32_0 : i32, i32
  }
}

</mosaic_0001>

<llo_original>
// kernel: net_forward.3
$region0: #{net_forward.3}
  #allocation0 [shape = 'u32[]', space=smem, size = 0x4, offset = 0x4, fixed_abs, tag = 'smem constant byte address 0x4 - core index']
  #allocation1 [shape = 'u32[144,128]{1,0:T(1,128)}', space=vmem, size = 0x12000, scoped, tag = 'internal scratch']
  %s0 = inlined_call_operand.vmem [shape: bf16[4,392,128], index: 0, kind: input, shape index: {}]
  %s1 = inlined_call_operand.vmem [shape: bf16[128,128], index: 1, kind: input, shape index: {}]
  %s2 = inlined_call_operand.vmem [shape: f32[1,128], index: 2, kind: input, shape index: {}]
  %s3 = inlined_call_operand.vmem [shape: bf16[392,128], index: 3, kind: output, shape index: {}]
  %s4 = sld [smem:[#allocation0]]
  $region86: #{net_forward.3} parent=0
    _
  %s6 = ssub.s32 1, %s4
  %s7 = scalar_select 0, %s6, %s4
  $region1: #{net_forward.3} parent=0
    #allocation2 [shape = 'u8[114688]{0}', space=vmem, size = 0x1c000, scoped, tag = 'input window, operand 0']
    loop: start=0, step=1, limit=9
    $region2: #{net_forward.3} parent=1 // loop_pre_header
      _
    $region3: #{net_forward.3} parent=1 // loop_header
      %s9 = sphi 0, %s13
      %p10 = scmp.ge.s32.totalorder %s9, 9
      %s19 = sphi 0, %s21
      %s22 = sphi 0, %s19
      %s23 = sphi 0, %s22
      %s39 = sphi 0, %s23
      %s43 = sphi 0, %s43
      %s45 = sphi 0, %s43
      %s46 = sphi 0, %s45
      %s60 = sphi 0, %s46
      %s64 = sphi 0, %s64
      %s66 = sphi 0, %s64
      %s67 = sphi 0, %s66
      %s81 = sphi 0, %s67
      %s87 = sphi 0, %s89
      %s90 = sphi 0, %s87
      %s91 = sphi 0, %s90
      %s107 = sphi 0, %s91
    $region4: #{net_forward.3} parent=1 // loop_header_branch
      %12 = sbr.rel (%p10) target = $region8
    $region5: #{net_forward.3} parent=1 // loop_body
      %s14 = ssub.s32 %s9, 1
      %s15 = ssub.s32 %s9, 2
      %s16 = sadd.s32 %s9, 1
      %s17 = ssub.s32 %s9, %s16
      %p18 = scmp.eq.s32.totalorder %s17, 0
      %s20 = sadd.s32 %s19, 1
      %s21 = scalar_select %p18, %s19, %s20
      %p24 = pneg %p18
      %p25 = scmp.eq.s32.totalorder %s9, 6
      %p26 = por %p24, %p25
      %p27 = scmp.ne.s32.totalorder %s19, %s22
      %p28 = scmp.eq.s32.totalorder %s9, 0
      %p29 = por %p27, %p28
      %p30 = scmp.ne.s32.totalorder %s19, %s22
      %p31 = scmp.eq.s32.totalorder %s14, 6
      %p32 = por %p30, %p31
      %p33 = scmp.ne.s32.totalorder %s22, %s23
      %p34 = scmp.eq.s32.totalorder %s14, 0
      %p35 = por %p33, %p34
      %p36 = scmp.ne.s32.totalorder %s22, %s23
      %p37 = scmp.eq.s32.totalorder %s15, 6
      %p38 = por %p36, %p37
      %p40 = scmp.ne.s32.totalorder %s23, %s39
      %p41 = scmp.eq.s32.totalorder %s15, 0
      %p42 = por %p40, %p41
      %s44 = sadd.s32 %s43, 1
      %p47 = scmp.eq.s32.totalorder %s9, 6
      %p48 = scmp.ne.s32.totalorder %s43, %s45
      %p49 = scmp.eq.s32.totalorder %s9, 0
      %p50 = por %p48, %p49
      %p51 = scmp.ne.s32.totalorder %s43, %s45
      %p52 = scmp.eq.s32.totalorder %s14, 6
      %p53 = por %p51, %p52
      %p54 = scmp.ne.s32.totalorder %s45, %s46
      %p55 = scmp.eq.s32.totalorder %s14, 0
      %p56 = por %p54, %p55
      %p57 = scmp.ne.s32.totalorder %s45, %s46
      %p58 = scmp.eq.s32.totalorder %s15, 6
      %p59 = por %p57, %p58
      %p61 = scmp.ne.s32.totalorder %s46, %s60
      %p62 = scmp.eq.s32.totalorder %s15, 0
      %p63 = por %p61, %p62
      %s65 = sadd.s32 %s64, 1
      %p68 = scmp.eq.s32.totalorder %s9, 6
      %p69 = scmp.ne.s32.totalorder %s64, %s66
      %p70 = scmp.eq.s32.totalorder %s9, 0
      %p71 = por %p69, %p70
      %p72 = scmp.ne.s32.totalorder %s64, %s66
      %p73 = scmp.eq.s32.totalorder %s14, 6
      %p74 = por %p72, %p73
      %p75 = scmp.ne.s32.totalorder %s66, %s67
      %p76 = scmp.eq.s32.totalorder %s14, 0
      %p77 = por %p75, %p76
      %p78 = scmp.ne.s32.totalorder %s66, %s67
      %p79 = scmp.eq.s32.totalorder %s15, 6
      %p80 = por %p78, %p79
      %p82 = scmp.ne.s32.totalorder %s67, %s81
      %p83 = scmp.eq.s32.totalorder %s15, 0
      %p84 = por %p82, %p83
      %s85 = ssub.s32 %s9, %s16
      %p86 = scmp.eq.s32.totalorder %s85, 0
      %s88 = sadd.s32 %s87, 1
      %s89 = scalar_select %p86, %s87, %s88
      %p92 = pneg %p86
      %p93 = scmp.eq.s32.totalorder %s9, 6
      %p94 = por %p92, %p93
      %p95 = scmp.ne.s32.totalorder %s87, %s90
      %p96 = scmp.eq.s32.totalorder %s9, 0
      %p97 = por %p95, %p96
      %p98 = scmp.ne.s32.totalorder %s87, %s90
      %p99 = scmp.eq.s32.totalorder %s14, 6
      %p100 = por %p98, %p99
      %p101 = scmp.ne.s32.totalorder %s90, %s91
      %p102 = scmp.eq.s32.totalorder %s14, 0
      %p103 = por %p101, %p102
      %p104 = scmp.ne.s32.totalorder %s90, %s91
      %p105 = scmp.eq.s32.totalorder %s15, 6
      %p106 = por %p104, %p105
      %p108 = scmp.ne.s32.totalorder %s91, %s107
      %p109 = scmp.eq.s32.totalorder %s15, 0
      %p110 = por %p108, %p109
      %p111 = scmp.le.s32.totalorder 1, %s9
      %p112 = scmp.lt.s32.totalorder %s9, 8
      %p113 = pnand %p111, %p112
      %p114 = pneg %p113
      // Predicated region
      $region9: #{net_forward.3} parent=5 // pred_check
        _
      $region10: #{net_forward.3} parent=5 // pred_check_branch
        %116 = sbr.rel (%p113) target = $region12
      $region11: #{net_forward.3} parent=5 // pred_region
        %s117 = ssub.s32 %s9, 1
        // Predicated region
        $region13: #{net_forward.3} parent=11 // pred_check
          %p118 = pneg %p56
        $region14: #{net_forward.3} parent=11 // pred_check_branch
          %120 = sbr.rel (%p118) target = $region16
        $region15: #{net_forward.3} parent=11 // pred_region
          _
        $region16: #{net_forward.3} parent=11 // pred_fallthru
          _
        // Predicated region
        $region17: #{net_forward.3} parent=11 // pred_check
          %p121 = pneg %p77
        $region18: #{net_forward.3} parent=11 // pred_check_branch
          %123 = sbr.rel (%p121) target = $region20
        $region19: #{net_forward.3} parent=11 // pred_region
          _
        $region20: #{net_forward.3} parent=11 // pred_fallthru
          _
      $region12: #{net_forward.3} parent=5 // pred_fallthru
        _
      %p124 = scmp.lt.s32.totalorder %s9, 7
      // Predicated region
      $region21: #{net_forward.3} parent=5 // pred_check
        %p125 = pneg %p124
      $region22: #{net_forward.3} parent=5 // pred_check_branch
        %127 = sbr.rel (%p125) target = $region24
      $region23: #{net_forward.3} parent=5 // pred_region
        // Predicated region
        $region25: #{net_forward.3} parent=23 // pred_check
          %p128 = pneg %p29
        $region26: #{net_forward.3} parent=23 // pred_check_branch
          %130 = sbr.rel (%p128) target = $region28
        $region27: #{net_forward.3} parent=23 // pred_region
          %s131 = sand.u32 %s19, 1
          %s132 = sand.u32 %s19, 1
          %s133 = smul.addr %s132, 112
          %s134 = scalar_lea.vmem [#allocation2], %s133
          %s135 = smul.u32 7, %s9
          %s136 = smul.addr %s135, 4
          %s137 = scalar_lea.vmem %s0, %s136
          // Predicated region
          $region29: #{net_forward.3} parent=27 // pred_check
            _
          $region30: #{net_forward.3} parent=27 // pred_check_branch
            %139 = sbr.rel (0) target = $region32
          $region31: #{net_forward.3} parent=27 // pred_region
            // Predicated region
            $region33: #{net_forward.3} parent=31 // pred_check
              _
            $region34: #{net_forward.3} parent=31 // pred_check_branch
              %141 = sbr.rel target = $region36
            $region35: #{net_forward.3} parent=31 // pred_region
              // Predicated region
              $region48: #{net_forward.3} parent=35 // pred_check
                _
              $region49: #{net_forward.3} parent=35 // pred_check_branch
                %210 = sbr.rel (0) target = $region51
              $region50: #{net_forward.3} parent=35 // pred_region
                loop: start=0, step=1, limit=1
                $region52: #{net_forward.3} parent=50 // loop_pre_header
                  _
                $region53: #{net_forward.3} parent=50 // loop_header
                  %s212 = sphi 0, %s216
                  %p213 = scmp.ge.s32.totalorder %s212, 1
                  %s217 = sphi %s137, %s137
                  %s218 = sphi %s134, %s134
                $region54: #{net_forward.3} parent=50 // loop_header_branch
                  %215 = sbr.rel (%p213) target = $region58
                $region55: #{net_forward.3} parent=50 // loop_body
                  _
                $region56: #{net_forward.3} parent=50 // loop_footer
                  %s216 = sadd.s32 1, %s212
                $region57: #{net_forward.3} parent=50 // loop_footer_branch
                  %211 = sbr.rel target = $region53
                $region58: #{net_forward.3} parent=50 // loop_exit
                  _
                loop: start=0, step=1, limit=1
                $region59: #{net_forward.3} parent=50 // loop_pre_header
                  _
                $region60: #{net_forward.3} parent=50 // loop_header
                  %s221 = sphi 0, %s225
                  %p222 = scmp.ge.s32.totalorder %s221, 1
                  %s226 = sphi %s137, %s137
                  %s227 = sphi %s134, %s134
                $region61: #{net_forward.3} parent=50 // loop_header_branch
                  %224 = sbr.rel (%p222) target = $region65
                $region62: #{net_forward.3} parent=50 // loop_body
                  %v228 = vld [vmem:[%s226] sm:$0xf]
                  %229 = vst [vmem:[%s227] sm:$0xf] %v228
                  %v230 = vld [vmem:[%s226 + $0x4] sm:$0xf]
                  %231 = vst [vmem:[%s227 + $0x4] sm:$0xf] %v230
                  %v232 = vld [vmem:[%s226 + $0x8] sm:$0xf]
                  %233 = vst [vmem:[%s227 + $0x8] sm:$0xf] %v232
                  %v234 = vld [vmem:[%s226 + $0xc] sm:$0xf]
                  %235 = vst [vmem:[%s227 + $0xc] sm:$0xf] %v234
                  %v236 = vld [vmem:[%s226 + $0x10] sm:$0xf]
                  %237 = vst [vmem:[%s227 + $0x10] sm:$0xf] %v236
                  %v238 = vld [vmem:[%s226 + $0x14] sm:$0xf]
                  %239 = vst [vmem:[%s227 + $0x14] sm:$0xf] %v238
                  %v240 = vld [vmem:[%s226 + $0x18] sm:$0xf]
                  %241 = vst [vmem:[%s227 + $0x18] sm:$0xf] %v240
                  %v242 = vld [vmem:[%s226 + $0xc4] sm:$0xf]
                  %243 = vst [vmem:[%s227 + $0x1c] sm:$0xf] %v242
                  %v244 = vld [vmem:[%s226 + $0xc8] sm:$0xf]
                  %245 = vst [vmem:[%s227 + $0x20] sm:$0xf] %v244
                  %v246 = vld [vmem:[%s226 + $0xcc] sm:$0xf]
                  %247 = vst [vmem:[%s227 + $0x24] sm:$0xf] %v246
                  %v248 = vld [vmem:[%s226 + $0xd0] sm:$0xf]
                  %249 = vst [vmem:[%s227 + $0x28] sm:$0xf] %v248
                  %v250 = vld [vmem:[%s226 + $0xd4] sm:$0xf]
                  %251 = vst [vmem:[%s227 + $0x2c] sm:$0xf] %v250
                  %v252 = vld [vmem:[%s226 + $0xd8] sm:$0xf]
                  %253 = vst [vmem:[%s227 + $0x30] sm:$0xf] %v252
                  %v254 = vld [vmem:[%s226 + $0xdc] sm:$0xf]
                  %255 = vst [vmem:[%s227 + $0x34] sm:$0xf] %v254
                  %v256 = vld [vmem:[%s226 + $0x188] sm:$0xf]
                  %257 = vst [vmem:[%s227 + $0x38] sm:$0xf] %v256
                  %v258 = vld [vmem:[%s226 + $0x18c] sm:$0xf]
                  %259 = vst [vmem:[%s227 + $0x3c] sm:$0xf] %v258
                  %v260 = vld [vmem:[%s226 + $0x190] sm:$0xf]
                  %261 = vst [vmem:[%s227 + $0x40] sm:$0xf] %v260
                  %v262 = vld [vmem:[%s226 + $0x194] sm:$0xf]
                  %263 = vst [vmem:[%s227 + $0x44] sm:$0xf] %v262
                  %v264 = vld [vmem:[%s226 + $0x198] sm:$0xf]
                  %265 = vst [vmem:[%s227 + $0x48] sm:$0xf] %v264
                  %v266 = vld [vmem:[%s226 + $0x19c] sm:$0xf]
                  %267 = vst [vmem:[%s227 + $0x4c] sm:$0xf] %v266
                  %v268 = vld [vmem:[%s226 + $0x1a0] sm:$0xf]
                  %269 = vst [vmem:[%s227 + $0x50] sm:$0xf] %v268
                  %v270 = vld [vmem:[%s226 + $0x24c] sm:$0xf]
                  %271 = vst [vmem:[%s227 + $0x54] sm:$0xf] %v270
                  %v272 = vld [vmem:[%s226 + $0x250] sm:$0xf]
                  %273 = vst [vmem:[%s227 + $0x58] sm:$0xf] %v272
                  %v274 = vld [vmem:[%s226 + $0x254] sm:$0xf]
                  %275 = vst [vmem:[%s227 + $0x5c] sm:$0xf] %v274
                  %v276 = vld [vmem:[%s226 + $0x258] sm:$0xf]
                  %277 = vst [vmem:[%s227 + $0x60] sm:$0xf] %v276
                  %v278 = vld [vmem:[%s226 + $0x25c] sm:$0xf]
                  %279 = vst [vmem:[%s227 + $0x64] sm:$0xf] %v278
                  %v280 = vld [vmem:[%s226 + $0x260] sm:$0xf]
                  %281 = vst [vmem:[%s227 + $0x68] sm:$0xf] %v280
                  %v282 = vld [vmem:[%s226 + $0x264] sm:$0xf]
                  %283 = vst [vmem:[%s227 + $0x6c] sm:$0xf] %v282
                $region63: #{net_forward.3} parent=50 // loop_footer
                  %s225 = sadd.s32 1, %s221
                $region64: #{net_forward.3} parent=50 // loop_footer_branch
                  %220 = sbr.rel target = $region60
                $region65: #{net_forward.3} parent=50 // loop_exit
                  _
              $region51: #{net_forward.3} parent=35 // pred_fallthru
                _
            $region36: #{net_forward.3} parent=31 // pred_fallthru
              _
            // Predicated region
            $region37: #{net_forward.3} parent=31 // pred_check
              _
            $region38: #{net_forward.3} parent=31 // pred_check_branch
              %143 = sbr.rel (0) target = $region40
            $region39: #{net_forward.3} parent=31 // pred_region
              loop: start=0, step=1, limit=1
              $region41: #{net_forward.3} parent=39 // loop_pre_header
                _
              $region42: #{net_forward.3} parent=39 // loop_header
                %s146 = sphi 0, %s150
                %p147 = scmp.ge.s32.totalorder %s146, 1
                %s151 = sphi %s137, %s137
                %s152 = sphi %s134, %s134
              $region43: #{net_forward.3} parent=39 // loop_header_branch
                %149 = sbr.rel (%p147) target = $region47
              $region44: #{net_forward.3} parent=39 // loop_body
                %v153 = vld [vmem:[%s151] sm:$0xf]
                %154 = vst [vmem:[%s152] sm:$0xf] %v153
                %v155 = vld [vmem:[%s151 + $0x4] sm:$0xf]
                %156 = vst [vmem:[%s152 + $0x4] sm:$0xf] %v155
                %v157 = vld [vmem:[%s151 + $0x8] sm:$0xf]
                %158 = vst [vmem:[%s152 + $0x8] sm:$0xf] %v157
                %v159 = vld [vmem:[%s151 + $0xc] sm:$0xf]
                %160 = vst [vmem:[%s152 + $0xc] sm:$0xf] %v159
                %v161 = vld [vmem:[%s151 + $0x10] sm:$0xf]
                %162 = vst [vmem:[%s152 + $0x10] sm:$0xf] %v161
                %v163 = vld [vmem:[%s151 + $0x14] sm:$0xf]
                %164 = vst [vmem:[%s152 + $0x14] sm:$0xf] %v163
                %v165 = vld [vmem:[%s151 + $0x18] sm:$0xf]
                %166 = vst [vmem:[%s152 + $0x18] sm:$0xf] %v165
                %v167 = vld [vmem:[%s151 + $0xc4] sm:$0xf]
                %168 = vst [vmem:[%s152 + $0x1c] sm:$0xf] %v167
                %v169 = vld [vmem:[%s151 + $0xc8] sm:$0xf]
                %170 = vst [vmem:[%s152 + $0x20] sm:$0xf] %v169
                %v171 = vld [vmem:[%s151 + $0xcc] sm:$0xf]
                %172 = vst [vmem:[%s152 + $0x24] sm:$0xf] %v171
                %v173 = vld [vmem:[%s151 + $0xd0] sm:$0xf]
                %174 = vst [vmem:[%s152 + $0x28] sm:$0xf] %v173
                %v175 = vld [vmem:[%s151 + $0xd4] sm:$0xf]
                %176 = vst [vmem:[%s152 + $0x2c] sm:$0xf] %v175
                %v177 = vld [vmem:[%s151 + $0xd8] sm:$0xf]
                %178 = vst [vmem:[%s152 + $0x30] sm:$0xf] %v177
                %v179 = vld [vmem:[%s151 + $0xdc] sm:$0xf]
                %180 = vst [vmem:[%s152 + $0x34] sm:$0xf] %v179
                %v181 = vld [vmem:[%s151 + $0x188] sm:$0xf]
                %182 = vst [vmem:[%s152 + $0x38] sm:$0xf] %v181
                %v183 = vld [vmem:[%s151 + $0x18c] sm:$0xf]
                %184 = vst [vmem:[%s152 + $0x3c] sm:$0xf] %v183
                %v185 = vld [vmem:[%s151 + $0x190] sm:$0xf]
                %186 = vst [vmem:[%s152 + $0x40] sm:$0xf] %v185
                %v187 = vld [vmem:[%s151 + $0x194] sm:$0xf]
                %188 = vst [vmem:[%s152 + $0x44] sm:$0xf] %v187
                %v189 = vld [vmem:[%s151 + $0x198] sm:$0xf]
                %190 = vst [vmem:[%s152 + $0x48] sm:$0xf] %v189
                %v191 = vld [vmem:[%s151 + $0x19c] sm:$0xf]
                %192 = vst [vmem:[%s152 + $0x4c] sm:$0xf] %v191
                %v193 = vld [vmem:[%s151 + $0x1a0] sm:$0xf]
                %194 = vst [vmem:[%s152 + $0x50] sm:$0xf] %v193
                %v195 = vld [vmem:[%s151 + $0x24c] sm:$0xf]
                %196 = vst [vmem:[%s152 + $0x54] sm:$0xf] %v195
                %v197 = vld [vmem:[%s151 + $0x250] sm:$0xf]
                %198 = vst [vmem:[%s152 + $0x58] sm:$0xf] %v197
                %v199 = vld [vmem:[%s151 + $0x254] sm:$0xf]
                %200 = vst [vmem:[%s152 + $0x5c] sm:$0xf] %v199
                %v201 = vld [vmem:[%s151 + $0x258] sm:$0xf]
                %202 = vst [vmem:[%s152 + $0x60] sm:$0xf] %v201
                %v203 = vld [vmem:[%s151 + $0x25c] sm:$0xf]
                %204 = vst [vmem:[%s152 + $0x64] sm:$0xf] %v203
                %v205 = vld [vmem:[%s151 + $0x260] sm:$0xf]
                %206 = vst [vmem:[%s152 + $0x68] sm:$0xf] %v205
                %v207 = vld [vmem:[%s151 + $0x264] sm:$0xf]
                %208 = vst [vmem:[%s152 + $0x6c] sm:$0xf] %v207
              $region45: #{net_forward.3} parent=39 // loop_footer
                %s150 = sadd.s32 1, %s146
              $region46: #{net_forward.3} parent=39 // loop_footer_branch
                %145 = sbr.rel target = $region42
              $region47: #{net_forward.3} parent=39 // loop_exit
                _
            $region40: #{net_forward.3} parent=31 // pred_fallthru
              _
          $region32: #{net_forward.3} parent=27 // pred_fallthru
            _
          %284 = vnop
        $region28: #{net_forward.3} parent=23 // pred_fallthru
          _
      $region24: #{net_forward.3} parent=5 // pred_fallthru
        _
      %p285 = scmp.le.s32.totalorder 1, %s9
      %p286 = scmp.lt.s32.totalorder %s9, 8
      %p287 = pnand %p285, %p286
      %p288 = pneg %p287
      // Predicated region
      $region66: #{net_forward.3} parent=5 // pred_check
        _
      $region67: #{net_forward.3} parent=5 // pred_check_branch
        %290 = sbr.rel (%p287) target = $region69
      $region68: #{net_forward.3} parent=5 // pred_region
        %s291 = ssub.s32 %s9, 1
        %s292 = sand.u32 %s22, 1
        %s293 = sand.u32 %s22, 1
        %s294 = smul.addr %s293, 112
        %s295 = scalar_lea.vmem [#allocation2], %s294
        // Predicated region
        $region70: #{net_forward.3} parent=68 // pred_check
          %p296 = pneg %p35
        $region71: #{net_forward.3} parent=68 // pred_check_branch
          %298 = sbr.rel (%p296) target = $region73
        $region72: #{net_forward.3} parent=68 // pred_region
          _
        $region73: #{net_forward.3} parent=68 // pred_fallthru
          _
        %s299 = sand.u32 %s22, 1
        %s300 = sand.u32 %s22, 1
        %s301 = smul.addr %s300, 112
        %s302 = scalar_lea.vmem [#allocation2], %s301
        %p303 = pneg %p35
        %p304 = pneg %p32
        %p305 = pneg %p56
        %p306 = pneg %p53
        %p307 = pneg %p77
        %p308 = pneg %p74
        %p309 = pneg %p103
        %p310 = pneg %p100
        %s311 = smul.u32 7, %s14
        %p312 = scmp.lt.s32.totalorder %s311, 48
        %s313 = scalar_select %p312, %s311, 48
        %s314 = smul.addr %s313, 4
        %s315 = scalar_lea.vmem %s3, %s314
        %s316 = smul.u32 7, %s14
        %s317 = smul.u32 7, %s14
        %p318 = scmp.lt.s32.totalorder %s317, 48
        %s319 = scalar_select %p318, %s317, 48
        %s320 = smul.addr %s319, 4
        %s321 = scalar_lea.vmem %s3, %s320
        %s322 = smul.u32 7, %s14
        %v324 = vld [vmem:[%s1] sm:$0xf]
        %v325 = vld [vmem:[%s1 + $0x4] sm:$0xf]
        %v326 = vld [vmem:[%s1 + $0x8] sm:$0xf]
        %v327 = vld [vmem:[%s1 + $0xc] sm:$0xf]
        %v328 = vld [vmem:[%s1 + $0x10] sm:$0xf]
        %v329 = vld [vmem:[%s1 + $0x14] sm:$0xf]
        %v330 = vld [vmem:[%s1 + $0x18] sm:$0xf]
        %v331 = vld [vmem:[%s1 + $0x1c] sm:$0xf]
        %v332 = vld [vmem:[%s1 + $0x20] sm:$0xf]
        %v333 = vld [vmem:[%s1 + $0x24] sm:$0xf]
        %v334 = vld [vmem:[%s1 + $0x28] sm:$0xf]
        %v335 = vld [vmem:[%s1 + $0x2c] sm:$0xf]
        %v336 = vld [vmem:[%s1 + $0x30] sm:$0xf]
        %v337 = vld [vmem:[%s1 + $0x34] sm:$0xf]
        %v338 = vld [vmem:[%s1 + $0x38] sm:$0xf]
        %v339 = vld [vmem:[%s1 + $0x3c] sm:$0xf]
        %v340 = vld [vmem:[%s295] sm:$0xf]
        %v341 = vld [vmem:[%s295 + $0x4] sm:$0xf]
        %v342 = vld [vmem:[%s295 + $0x8] sm:$0xf]
        %v343 = vld [vmem:[%s295 + $0xc] sm:$0xf]
        %v344 = vld [vmem:[%s295 + $0x10] sm:$0xf]
        %v345 = vld [vmem:[%s295 + $0x14] sm:$0xf]
        %v346 = vld [vmem:[%s295 + $0x18] sm:$0xf]
        %v354 = vunpack.c.l.b16 %v340
        %v355 = vunpack.c.l.b16 %v341
        %v356 = vunpack.c.l.b16 %v342
        %v357 = vunpack.c.l.b16 %v343
        %v358 = vunpack.c.l.b16 %v344
        %v359 = vunpack.c.l.b16 %v345
        %v360 = vunpack.c.l.b16 %v346
        %v361 = vpack.c.b16 %v355, %v354
        %v362 = vpack.c.b16 %v357, %v356
        %v363 = vpack.c.b16 %v359, %v358
        %v364 = vpack.c.b16 %v360, %v360
        %v385 = vunpack.c.l.b16 %v324
        %v386 = vunpack.c.l.b16 %v325
        %v387 = vunpack.c.l.b16 %v326
        %v388 = vunpack.c.l.b16 %v327
        %v389 = vunpack.c.l.b16 %v328
        %v390 = vunpack.c.l.b16 %v329
        %v391 = vunpack.c.l.b16 %v330
        %v392 = vunpack.c.l.b16 %v331
        %v393 = vunpack.c.l.b16 %v332
        %v394 = vunpack.c.l.b16 %v333
        %v395 = vunpack.c.l.b16 %v334
        %v396 = vunpack.c.l.b16 %v335
        %v397 = vunpack.c.l.b16 %v336
        %v398 = vunpack.c.l.b16 %v337
        %v399 = vunpack.c.l.b16 %v338
        %v400 = vunpack.c.l.b16 %v339
        %v401 = vpack.c.b16 %v386, %v385
        %v402 = vpack.c.b16 %v388, %v387
        %v403 = vpack.c.b16 %v390, %v389
        %v404 = vpack.c.b16 %v392, %v391
        %v405 = vpack.c.b16 %v394, %v393
        %v406 = vpack.c.b16 %v396, %v395
        %v407 = vpack.c.b16 %v398, %v397
        %v408 = vpack.c.b16 %v400, %v399
        %417 = vmatprep.subr.bf16.mxu0 0
        %418 = vmatpush1.bf16.msra.mxu0 %v401
        %419 = vmatprep.subr.bf16.mxu0 0
        %420 = vmatpush1.bf16.msra.mxu0 %v402
        %421 = vmatprep.subr.bf16.mxu0 0
        %422 = vmatpush1.bf16.msra.mxu0 %v403
        %423 = vmatprep.subr.bf16.mxu0 0
        %424 = vmatpush1.bf16.msra.mxu0 %v404
        %425 = vmatprep.subr.bf16.mxu0 0
        %426 = vmatpush1.bf16.msra.mxu0 %v405
        %427 = vmatprep.subr.bf16.mxu0 0
        %428 = vmatpush1.bf16.msra.mxu0 %v406
        %429 = vmatprep.subr.bf16.mxu0 0
        %430 = vmatpush1.bf16.msra.mxu0 %v407
        %431 = vmatprep.subr.bf16.mxu0 0
        %432 = vmatpush1.bf16.msra.mxu0 %v408
        %433 = vmatprep.subr.bf16.mxu0 0
        %434 = vmatpush1.bf16.msra.mxu0 0
        %435 = vmatprep.subr.bf16.mxu0 0
        %436 = vmatpush1.bf16.msra.mxu0 0
        %437 = vmatprep.subr.bf16.mxu0 0
        %438 = vmatpush1.bf16.msra.mxu0 0
        %439 = vmatprep.subr.bf16.mxu0 0
        %440 = vmatpush1.bf16.msra.mxu0 0
        %441 = vmatprep.subr.bf16.mxu0 0
        %442 = vmatpush1.bf16.msra.mxu0 0
        %443 = vmatprep.subr.bf16.mxu0 0
        %444 = vmatpush1.bf16.msra.mxu0 0
        %445 = vmatprep.subr.bf16.mxu0 0
        %446 = vmatpush1.bf16.msra.mxu0 0
        %447 = vmatprep.subr.bf16.mxu0 0
        %448 = vmatpush1.bf16.msra.mxu0 0
        %449 = vmatprep.mubr.bf16.mxu0 0
        %450 = vmatmul.mubr.bf16.gmra.mrb[0].mxu0 %v361
        %v451 = vpop.f32.mrb[0].mxu0
        %v452 = vadd.f32 0.0, %v451
        %v453 = vpop.f32.mrb[0].mxu0
        %v454 = vpop.f32.mrb[0].mxu0
        %v455 = vadd.f32 0.0, %v454
        %v456 = vpop.f32.mrb[0].mxu0
        %457 = vmatprep.mubr.bf16.mxu0 0
        %458 = vmatmul.mubr.bf16.gmra.mrb[0].mxu0 %v362
        %v459 = vpop.f32.mrb[0].mxu0
        %v460 = vadd.f32 0.0, %v459
        %v461 = vpop.f32.mrb[0].mxu0
        %v462 = vpop.f32.mrb[0].mxu0
        %v463 = vadd.f32 0.0, %v462
        %v464 = vpop.f32.mrb[0].mxu0
        %465 = vmatprep.mubr.bf16.mxu0 0
        %466 = vmatmul.mubr.bf16.gmra.mrb[0].mxu0 %v363
        %v467 = vpop.f32.mrb[0].mxu0
        %v468 = vadd.f32 0.0, %v467
        %v469 = vpop.f32.mrb[0].mxu0
        %v470 = vpop.f32.mrb[0].mxu0
        %v471 = vadd.f32 0.0, %v470
        %v472 = vpop.f32.mrb[0].mxu0
        %473 = vmatprep.mubr.bf16.mxu0 0
        %474 = vmatmul.mubr.bf16.gmra.mrb[0].mxu0 %v364
        %v475 = vpop.f32.mrb[0].mxu0
        %v476 = vadd.f32 0.0, %v475
        %v477 = vpop.f32.mrb[0].mxu0
        %v478 = vpop.f32.mrb[0].mxu0
        %v479 = vpop.f32.mrb[0].mxu0
        %480 = vdwg.mxu0
        %s481 = scalar_lea.vmem %s295, 28 [#allocation2]
        %v482 = vld [vmem:[%s481] sm:$0xf]
        %v483 = vld [vmem:[%s481 + $0x4] sm:$0xf]
        %v484 = vld [vmem:[%s481 + $0x8] sm:$0xf]
        %v485 = vld [vmem:[%s481 + $0xc] sm:$0xf]
        %v486 = vld [vmem:[%s481 + $0x10] sm:$0xf]
        %v487 = vld [vmem:[%s481 + $0x14] sm:$0xf]
        %v488 = vld [vmem:[%s481 + $0x18] sm:$0xf]
        %v496 = vunpack.c.l.b16 %v482
        %v497 = vunpack.c.l.b16 %v483
        %v498 = vunpack.c.l.b16 %v484
        %v499 = vunpack.c.l.b16 %v485
        %v500 = vunpack.c.l.b16 %v486
        %v501 = vunpack.c.l.b16 %v487
        %v502 = vunpack.c.l.b16 %v488
        %v503 = vpack.c.b16 %v497, %v496
        %v504 = vpack.c.b16 %v499, %v498
        %v505 = vpack.c.b16 %v501, %v500
        %v506 = vpack.c.b16 %v502, %v502
        %511 = vmatprep.subr.bf16.mxu0 0
        %512 = vmatpush1.bf16.msra.mxu0 %v401
        %513 = vmatprep.subr.bf16.mxu0 0
        %514 = vmatpush1.bf16.msra.mxu0 %v402
        %515 = vmatprep.subr.bf16.mxu0 0
        %516 = vmatpush1.bf16.msra.mxu0 %v403
        %517 = vmatprep.subr.bf16.mxu0 0
        %518 = vmatpush1.bf16.msra.mxu0 %v404
        %519 = vmatprep.subr.bf16.mxu0 0
        %520 = vmatpush1.bf16.msra.mxu0 %v405
        %521 = vmatprep.subr.bf16.mxu0 0
        %522 = vmatpush1.bf16.msra.mxu0 %v406
        %523 = vmatprep.subr.bf16.mxu0 0
        %524 = vmatpush1.bf16.msra.mxu0 %v407
        %525 = vmatprep.subr.bf16.mxu0 0
        %526 = vmatpush1.bf16.msra.mxu0 %v408
        %527 = vmatprep.subr.bf16.mxu0 0
        %528 = vmatpush1.bf16.msra.mxu0 0
        %529 = vmatprep.subr.bf16.mxu0 0
        %530 = vmatpush1.bf16.msra.mxu0 0
        %531 = vmatprep.subr.bf16.mxu0 0
        %532 = vmatpush1.bf16.msra.mxu0 0
        %533 = vmatprep.subr.bf16.mxu0 0
        %534 = vmatpush1.bf16.msra.mxu0 0
        %535 = vmatprep.subr.bf16.mxu0 0
        %536 = vmatpush1.bf16.msra.mxu0 0
        %537 = vmatprep.subr.bf16.mxu0 0
        %538 = vmatpush1.bf16.msra.mxu0 0
        %539 = vmatprep.subr.bf16.mxu0 0
        %540 = vmatpush1.bf16.msra.mxu0 0
        %541 = vmatprep.subr.bf16.mxu0 0
        %542 = vmatpush1.bf16.msra.mxu0 0
        %543 = vmatprep.mubr.bf16.mxu0 0
        %544 = vmatmul.mubr.bf16.gmra.mrb[0].mxu0 %v503
        %v545 = vpop.f32.mrb[0].mxu0
        %v546 = vadd.f32 0.0, %v545
        %v547 = vpop.f32.mrb[0].mxu0
        %v548 = vpop.f32.mrb[0].mxu0
        %v549 = vadd.f32 0.0, %v548
        %v550 = vpop.f32.mrb[0].mxu0
        %551 = vmatprep.mubr.bf16.mxu0 0
        %552 = vmatmul.mubr.bf16.gmra.mrb[0].mxu0 %v504
        %v553 = vpop.f32.mrb[0].mxu0
        %v554 = vadd.f32 0.0, %v553
        %v555 = vpop.f32.mrb[0].mxu0
        %v556 = vpop.f32.mrb[0].mxu0
        %v557 = vadd.f32 0.0, %v556
        %v558 = vpop.f32.mrb[0].mxu0
        %559 = vmatprep.mubr.bf16.mxu0 0
        %560 = vmatmul.mubr.bf16.gmra.mrb[0].mxu0 %v505
        %v561 = vpop.f32.mrb[0].mxu0
        %v562 = vadd.f32 0.0, %v561
        %v563 = vpop.f32.mrb[0].mxu0
        %v564 = vpop.f32.mrb[0].mxu0
        %v565 = vadd.f32 0.0, %v564
        %v566 = vpop.f32.mrb[0].mxu0
        %567 = vmatprep.mubr.bf16.mxu0 0
        %568 = vmatmul.mubr.bf16.gmra.mrb[0].mxu0 %v506
        %v569 = vpop.f32.mrb[0].mxu0
        %v570 = vadd.f32 0.0, %v569
        %v571 = vpop.f32.mrb[0].mxu0
        %v572 = vpop.f32.mrb[0].mxu0
        %v573 = vpop.f32.mrb[0].mxu0
        %574 = vdwg.mxu0
        %v575 = vmax.f32 %v452, %v546
        %v576 = vmax.f32 %v455, %v549
        %v577 = vmax.f32 %v460, %v554
        %v578 = vmax.f32 %v463, %v557
        %v579 = vmax.f32 %v468, %v562
        %v580 = vmax.f32 %v471, %v565
        %v581 = vmax.f32 %v476, %v570
        %s582 = scalar_lea.vmem %s295, 56 [#allocation2]
        %v583 = vld [vmem:[%s582] sm:$0xf]
        %v584 = vld [vmem:[%s582 + $0x4] sm:$0xf]
        %v585 = vld [vmem:[%s582 + $0x8] sm:$0xf]
        %v586 = vld [vmem:[%s582 + $0xc] sm:$0xf]
        %v587 = vld [vmem:[%s582 + $0x10] sm:$0xf]
        %v588 = vld [vmem:[%s582 + $0x14] sm:$0xf]
        %v589 = vld [vmem:[%s582 + $0x18] sm:$0xf]
        %v597 = vunpack.c.l.b16 %v583
        %v598 = vunpack.c.l.b16 %v584
        %v599 = vunpack.c.l.b16 %v585
        %v600 = vunpack.c.l.b16 %v586
        %v601 = vunpack.c.l.b16 %v587
        %v602 = vunpack.c.l.b16 %v588
        %v603 = vunpack.c.l.b16 %v589
        %v604 = vpack.c.b16 %v598, %v597
        %v605 = vpack.c.b16 %v600, %v599
        %v606 = vpack.c.b16 %v602, %v601
        %v607 = vpack.c.b16 %v603, %v603
        %612 = vmatprep.subr.bf16.mxu0 0
        %613 = vmatpush1.bf16.msra.mxu0 %v401
        %614 = vmatprep.subr.bf16.mxu0 0
        %615 = vmatpush1.bf16.msra.mxu0 %v402
        %616 = vmatprep.subr.bf16.mxu0 0
        %617 = vmatpush1.bf16.msra.mxu0 %v403
        %618 = vmatprep.subr.bf16.mxu0 0
        %619 = vmatpush1.bf16.msra.mxu0 %v404
        %620 = vmatprep.subr.bf16.mxu0 0
        %621 = vmatpush1.bf16.msra.mxu0 %v405
        %622 = vmatprep.subr.bf16.mxu0 0
        %623 = vmatpush1.bf16.msra.mxu0 %v406
        %624 = vmatprep.subr.bf16.mxu0 0
        %625 = vmatpush1.bf16.msra.mxu0 %v407
        %626 = vmatprep.subr.bf16.mxu0 0
        %627 = vmatpush1.bf16.msra.mxu0 %v408
        %628 = vmatprep.subr.bf16.mxu0 0
        %629 = vmatpush1.bf16.msra.mxu0 0
        %630 = vmatprep.subr.bf16.mxu0 0
        %631 = vmatpush1.bf16.msra.mxu0 0
        %632 = vmatprep.subr.bf16.mxu0 0
        %633 = vmatpush1.bf16.msra.mxu0 0
        %634 = vmatprep.subr.bf16.mxu0 0
        %635 = vmatpush1.bf16.msra.mxu0 0
        %636 = vmatprep.subr.bf16.mxu0 0
        %637 = vmatpush1.bf16.msra.mxu0 0
        %638 = vmatprep.subr.bf16.mxu0 0
        %639 = vmatpush1.bf16.msra.mxu0 0
        %640 = vmatprep.subr.bf16.mxu0 0
        %641 = vmatpush1.bf16.msra.mxu0 0
        %642 = vmatprep.subr.bf16.mxu0 0
        %643 = vmatpush1.bf16.msra.mxu0 0
        %644 = vmatprep.mubr.bf16.mxu0 0
        %645 = vmatmul.mubr.bf16.gmra.mrb[0].mxu0 %v604
        %v646 = vpop.f32.mrb[0].mxu0
        %v647 = vadd.f32 0.0, %v646
        %v648 = vpop.f32.mrb[0].mxu0
        %v649 = vpop.f32.mrb[0].mxu0
        %v650 = vadd.f32 0.0, %v649
        %v651 = vpop.f32.mrb[0].mxu0
        %652 = vmatprep.mubr.bf16.mxu0 0
        %653 = vmatmul.mubr.bf16.gmra.mrb[0].mxu0 %v605
        %v654 = vpop.f32.mrb[0].mxu0
        %v655 = vadd.f32 0.0, %v654
        %v656 = vpop.f32.mrb[0].mxu0
        %v657 = vpop.f32.mrb[0].mxu0
        %v658 = vadd.f32 0.0, %v657
        %v659 = vpop.f32.mrb[0].mxu0
        %660 = vmatprep.mubr.bf16.mxu0 0
        %661 = vmatmul.mubr.bf16.gmra.mrb[0].mxu0 %v606
        %v662 = vpop.f32.mrb[0].mxu0
        %v663 = vadd.f32 0.0, %v662
        %v664 = vpop.f32.mrb[0].mxu0
        %v665 = vpop.f32.mrb[0].mxu0
        %v666 = vadd.f32 0.0, %v665
        %v667 = vpop.f32.mrb[0].mxu0
        %668 = vmatprep.mubr.bf16.mxu0 0
        %669 = vmatmul.mubr.bf16.gmra.mrb[0].mxu0 %v607
        %v670 = vpop.f32.mrb[0].mxu0
        %v671 = vadd.f32 0.0, %v670
        %v672 = vpop.f32.mrb[0].mxu0
        %v673 = vpop.f32.mrb[0].mxu0
        %v674 = vpop.f32.mrb[0].mxu0
        %675 = vdwg.mxu0
        %v676 = vmax.f32 %v575, %v647
        %v677 = vmax.f32 %v576, %v650
        %v678 = vmax.f32 %v577, %v655
        %v679 = vmax.f32 %v578, %v658
        %v680 = vmax.f32 %v579, %v663
        %v681 = vmax.f32 %v580, %v666
        %v682 = vmax.f32 %v581, %v671
        %s683 = scalar_lea.vmem %s295, 84 [#allocation2]
        %v684 = vld [vmem:[%s683] sm:$0xf]
        %v685 = vld [vmem:[%s683 + $0x4] sm:$0xf]
        %v686 = vld [vmem:[%s683 + $0x8] sm:$0xf]
        %v687 = vld [vmem:[%s683 + $0xc] sm:$0xf]
        %v688 = vld [vmem:[%s683 + $0x10] sm:$0xf]
        %v689 = vld [vmem:[%s683 + $0x14] sm:$0xf]
        %v690 = vld [vmem:[%s683 + $0x18] sm:$0xf]
        %v698 = vunpack.c.l.b16 %v684
        %v699 = vunpack.c.l.b16 %v685
        %v700 = vunpack.c.l.b16 %v686
        %v701 = vunpack.c.l.b16 %v687
        %v702 = vunpack.c.l.b16 %v688
        %v703 = vunpack.c.l.b16 %v689
        %v704 = vunpack.c.l.b16 %v690
        %v705 = vpack.c.b16 %v699, %v698
        %v706 = vpack.c.b16 %v701, %v700
        %v707 = vpack.c.b16 %v703, %v702
        %v708 = vpack.c.b16 %v704, %v704
        %713 = vmatprep.subr.bf16.mxu0 0
        %714 = vmatpush1.bf16.msra.mxu0 %v401
        %715 = vmatprep.subr.bf16.mxu0 0
        %716 = vmatpush1.bf16.msra.mxu0 %v402
        %717 = vmatprep.subr.bf16.mxu0 0
        %718 = vmatpush1.bf16.msra.mxu0 %v403
        %719 = vmatprep.subr.bf16.mxu0 0
        %720 = vmatpush1.bf16.msra.mxu0 %v404
        %721 = vmatprep.subr.bf16.mxu0 0
        %722 = vmatpush1.bf16.msra.mxu0 %v405
        %723 = vmatprep.subr.bf16.mxu0 0
        %724 = vmatpush1.bf16.msra.mxu0 %v406
        %725 = vmatprep.subr.bf16.mxu0 0
        %726 = vmatpush1.bf16.msra.mxu0 %v407
        %727 = vmatprep.subr.bf16.mxu0 0
        %728 = vmatpush1.bf16.msra.mxu0 %v408
        %729 = vmatprep.subr.bf16.mxu0 0
        %730 = vmatpush1.bf16.msra.mxu0 0
        %731 = vmatprep.subr.bf16.mxu0 0
        %732 = vmatpush1.bf16.msra.mxu0 0
        %733 = vmatprep.subr.bf16.mxu0 0
        %734 = vmatpush1.bf16.msra.mxu0 0
        %735 = vmatprep.subr.bf16.mxu0 0
        %736 = vmatpush1.bf16.msra.mxu0 0
        %737 = vmatprep.subr.bf16.mxu0 0
        %738 = vmatpush1.bf16.msra.mxu0 0
        %739 = vmatprep.subr.bf16.mxu0 0
        %740 = vmatpush1.bf16.msra.mxu0 0
        %741 = vmatprep.subr.bf16.mxu0 0
        %742 = vmatpush1.bf16.msra.mxu0 0
        %743 = vmatprep.subr.bf16.mxu0 0
        %744 = vmatpush1.bf16.msra.mxu0 0
        %745 = vmatprep.mubr.bf16.mxu0 0
        %746 = vmatmul.mubr.bf16.gmra.mrb[0].mxu0 %v705
        %v747 = vpop.f32.mrb[0].mxu0
        %v748 = vadd.f32 0.0, %v747
        %v749 = vpop.f32.mrb[0].mxu0
        %v750 = vpop.f32.mrb[0].mxu0
        %v751 = vadd.f32 0.0, %v750
        %v752 = vpop.f32.mrb[0].mxu0
        %753 = vmatprep.mubr.bf16.mxu0 0
        %754 = vmatmul.mubr.bf16.gmra.mrb[0].mxu0 %v706
        %v755 = vpop.f32.mrb[0].mxu0
        %v756 = vadd.f32 0.0, %v755
        %v757 = vpop.f32.mrb[0].mxu0
        %v758 = vpop.f32.mrb[0].mxu0
        %v759 = vadd.f32 0.0, %v758
        %v760 = vpop.f32.mrb[0].mxu0
        %761 = vmatprep.mubr.bf16.mxu0 0
        %762 = vmatmul.mubr.bf16.gmra.mrb[0].mxu0 %v707
        %v763 = vpop.f32.mrb[0].mxu0
        %v764 = vadd.f32 0.0, %v763
        %v765 = vpop.f32.mrb[0].mxu0
        %v766 = vpop.f32.mrb[0].mxu0
        %v767 = vadd.f32 0.0, %v766
        %v768 = vpop.f32.mrb[0].mxu0
        %769 = vmatprep.mubr.bf16.mxu0 0
        %770 = vmatmul.mubr.bf16.gmra.mrb[0].mxu0 %v708
        %v771 = vpop.f32.mrb[0].mxu0
        %v772 = vadd.f32 0.0, %v771
        %v773 = vpop.f32.mrb[0].mxu0
        %v774 = vpop.f32.mrb[0].mxu0
        %v775 = vpop.f32.mrb[0].mxu0
        %776 = vdwg.mxu0
        %v777 = vmax.f32 %v676, %v748
        %v778 = vmax.f32 %v677, %v751
        %v779 = vmax.f32 %v678, %v756
        %v780 = vmax.f32 %v679, %v759
        %v781 = vmax.f32 %v680, %v764
        %v782 = vmax.f32 %v681, %v767
        %v783 = vmax.f32 %v682, %v772
        %v784 = vld [vmem:[%s2] sm:$0x1]
        %v786 = vlaneseq
        %v787 = vshrl.u32 %v786, 7
        %v788 = vsub.s32 0, %v787
        %v789 = vrot.slane %v784, %v788
        %v791 = vadd.f32 %v777, %v789
        %v792 = vadd.f32 %v778, %v789
        %v793 = vadd.f32 %v779, %v789
        %v794 = vadd.f32 %v780, %v789
        %v795 = vadd.f32 %v781, %v789
        %v796 = vadd.f32 %v782, %v789
        %v797 = vadd.f32 %v783, %v789
        %v798 = vmax.f32 %v791, 0.0
        %v799 = vmax.f32 %v792, 0.0
        %v800 = vmax.f32 %v793, 0.0
        %v801 = vmax.f32 %v794, 0.0
        %v802 = vmax.f32 %v795, 0.0
        %v803 = vmax.f32 %v796, 0.0
        %v804 = vmax.f32 %v797, 0.0
        %v805 = vpack.c.bf16 %v799, %v798
        %v806 = vpack.c.bf16 %v801, %v800
        %v807 = vpack.c.bf16 %v803, %v802
        %v808 = vpack.c.bf16 %v804, %v804
        %v813 = vunpack.c.l.b16 %v805
        %v814 = vunpack.c.h.b16 %v805
        %v815 = vunpack.c.l.b16 %v806
        %v816 = vunpack.c.h.b16 %v806
        %v817 = vunpack.c.l.b16 %v807
        %v818 = vunpack.c.h.b16 %v807
        %v819 = vunpack.c.l.b16 %v808
        %v820 = vpack.c.b16 %v813, %v813
        %v821 = vpack.c.b16 %v814, %v814
        %v822 = vpack.c.b16 %v815, %v815
        %v823 = vpack.c.b16 %v816, %v816
        %v824 = vpack.c.b16 %v817, %v817
        %v825 = vpack.c.b16 %v818, %v818
        %v826 = vpack.c.b16 %v819, %v819
        %834 = vst [vmem:[%s321] sm:$0xf] %v820
        %835 = vst [vmem:[%s321 + $0x4] sm:$0xf] %v821
        %836 = vst [vmem:[%s321 + $0x8] sm:$0xf] %v822
        %837 = vst [vmem:[%s321 + $0xc] sm:$0xf] %v823
        %838 = vst [vmem:[%s321 + $0x10] sm:$0xf] %v824
        %839 = vst [vmem:[%s321 + $0x14] sm:$0xf] %v825
        %840 = vst [vmem:[%s321 + $0x18] sm:$0xf] %v826
        %s841 = smul.u32 7, %s14
        %p842 = scmp.lt.s32.totalorder %s841, 48
        %s843 = scalar_select %p842, %s841, 48
        %s844 = smul.addr %s843, 4
        %s845 = scalar_lea.vmem %s3, %s844
        // Predicated region
        $region74: #{net_forward.3} parent=68 // pred_check
          %p846 = pneg %p100
        $region75: #{net_forward.3} parent=68 // pred_check_branch
          %848 = sbr.rel (%p846) target = $region77
        $region76: #{net_forward.3} parent=68 // pred_region
          %s849 = smul.u32 7, %s14
        $region77: #{net_forward.3} parent=68 // pred_fallthru
          _
      $region69: #{net_forward.3} parent=5 // pred_fallthru
        _
      %p850 = scmp.le.s32.totalorder 2, %s9
      // Predicated region
      $region78: #{net_forward.3} parent=5 // pred_check
        %p851 = pneg %p850
      $region79: #{net_forward.3} parent=5 // pred_check_branch
        %853 = sbr.rel (%p851) target = $region81
      $region80: #{net_forward.3} parent=5 // pred_region
        %s854 = ssub.s32 %s9, 2
        // Predicated region
        $region82: #{net_forward.3} parent=80 // pred_check
          %p855 = pneg %p106
        $region83: #{net_forward.3} parent=80 // pred_check_branch
          %857 = sbr.rel (%p855) target = $region85
        $region84: #{net_forward.3} parent=80 // pred_region
          %s858 = smul.u32 7, %s15
          %p859 = scmp.lt.s32.totalorder %s858, 48
          %s860 = scalar_select %p859, %s858, 48
          %s861 = smul.addr %s860, 4
          %s862 = scalar_lea.vmem %s3, %s861
        $region85: #{net_forward.3} parent=80 // pred_fallthru
          _
      $region81: #{net_forward.3} parent=5 // pred_fallthru
        _
    $region6: #{net_forward.3} parent=1 // loop_footer
      %s13 = sadd.s32 1, %s9
    $region7: #{net_forward.3} parent=1 // loop_footer_branch
      %8 = sbr.rel target = $region3
    $region8: #{net_forward.3} parent=1 // loop_exit
      _

// kernel: net_forward.4
$region0: #{net_forward.4}
  #allocation0 [shape = 'u32[]', space=smem, size = 0x4, offset = 0x4, fixed_abs, tag = 'smem constant byte address 0x4 - core index']
  #allocation1 [shape = 'u32[144,128]{1,0:T(1,128)}', space=vmem, size = 0x12000, scoped, tag = 'internal scratch']
  %s0 = inlined_call_operand.vmem [shape: bf16[4,56,256], index: 0, kind: input, shape index: {}]
  %s1 = inlined_call_operand.vmem [shape: bf16[256,128], index: 1, kind: input, shape index: {}]
  %s2 = inlined_call_operand.vmem [shape: f32[1,128], index: 2, kind: input, shape index: {}]
  %s3 = inlined_call_operand.vmem [shape: bf16[56,128], index: 3, kind: output, shape index: {}]
  %s4 = sld [smem:[#allocation0]]
  $region22: #{net_forward.4} parent=0
    _
  %s6 = ssub.s32 1, %s4
  %s7 = scalar_select 0, %s6, %s4
  // Predicated region
  $region2: #{net_forward.4} parent=0 // pred_check
    _
  $region3: #{net_forward.4} parent=0 // pred_check_branch
    %9 = sbr.rel (0) target = $region5
  $region4: #{net_forward.4} parent=0 // pred_region
    _
  $region5: #{net_forward.4} parent=0 // pred_fallthru
    _
  // Predicated region
  $region6: #{net_forward.4} parent=0 // pred_check
    _
  $region7: #{net_forward.4} parent=0 // pred_check_branch
    %11 = sbr.rel (0) target = $region9
  $region8: #{net_forward.4} parent=0 // pred_region
    _
  $region9: #{net_forward.4} parent=0 // pred_fallthru
    _
  // Predicated region
  $region10: #{net_forward.4} parent=0 // pred_check
    _
  $region11: #{net_forward.4} parent=0 // pred_check_branch
    %13 = sbr.rel (0) target = $region13
  $region12: #{net_forward.4} parent=0 // pred_region
    _
  $region13: #{net_forward.4} parent=0 // pred_fallthru
    _
  %v15 = vld [vmem:[%s1] sm:$0xf]
  %v16 = vld [vmem:[%s1 + $0x4] sm:$0xf]
  %v17 = vld [vmem:[%s1 + $0x8] sm:$0xf]
  %v18 = vld [vmem:[%s1 + $0xc] sm:$0xf]
  %v19 = vld [vmem:[%s1 + $0x10] sm:$0xf]
  %v20 = vld [vmem:[%s1 + $0x14] sm:$0xf]
  %v21 = vld [vmem:[%s1 + $0x18] sm:$0xf]
  %v22 = vld [vmem:[%s1 + $0x1c] sm:$0xf]
  %v23 = vld [vmem:[%s1 + $0x20] sm:$0xf]
  %v24 = vld [vmem:[%s1 + $0x24] sm:$0xf]
  %v25 = vld [vmem:[%s1 + $0x28] sm:$0xf]
  %v26 = vld [vmem:[%s1 + $0x2c] sm:$0xf]
  %v27 = vld [vmem:[%s1 + $0x30] sm:$0xf]
  %v28 = vld [vmem:[%s1 + $0x34] sm:$0xf]
  %v29 = vld [vmem:[%s1 + $0x38] sm:$0xf]
  %v30 = vld [vmem:[%s1 + $0x3c] sm:$0xf]
  %v31 = vld [vmem:[%s1 + $0x40] sm:$0xf]
  %v32 = vld [vmem:[%s1 + $0x44] sm:$0xf]
  %v33 = vld [vmem:[%s1 + $0x48] sm:$0xf]
  %v34 = vld [vmem:[%s1 + $0x4c] sm:$0xf]
  %v35 = vld [vmem:[%s1 + $0x50] sm:$0xf]
  %v36 = vld [vmem:[%s1 + $0x54] sm:$0xf]
  %v37 = vld [vmem:[%s1 + $0x58] sm:$0xf]
  %v38 = vld [vmem:[%s1 + $0x5c] sm:$0xf]
  %v39 = vld [vmem:[%s1 + $0x60] sm:$0xf]
  %v40 = vld [vmem:[%s1 + $0x64] sm:$0xf]
  %v41 = vld [vmem:[%s1 + $0x68] sm:$0xf]
  %v42 = vld [vmem:[%s1 + $0x6c] sm:$0xf]
  %v43 = vld [vmem:[%s1 + $0x70] sm:$0xf]
  %v44 = vld [vmem:[%s1 + $0x74] sm:$0xf]
  %v45 = vld [vmem:[%s1 + $0x78] sm:$0xf]
  %v46 = vld [vmem:[%s1 + $0x7c] sm:$0xf]
  %v47 = vld [vmem:[%s0] sm:$0xff]
  %v48 = vld [vmem:[%s0 + $0x8] sm:$0xff]
  %v49 = vld [vmem:[%s0 + $0x10] sm:$0xff]
  %v50 = vld [vmem:[%s0 + $0x18] sm:$0xff]
  %v51 = vld [vmem:[%s0 + $0x20] sm:$0xff]
  %v52 = vld [vmem:[%s0 + $0x28] sm:$0xff]
  %v53 = vld [vmem:[%s0 + $0x30] sm:$0xff]
  %v61 = vunpack.c.l.b16 %v47
  %v62 = vunpack.c.h.b16 %v47
  %v63 = vunpack.c.l.b16 %v48
  %v64 = vunpack.c.h.b16 %v48
  %v65 = vunpack.c.l.b16 %v49
  %v66 = vunpack.c.h.b16 %v49
  %v67 = vunpack.c.l.b16 %v50
  %v68 = vunpack.c.h.b16 %v50
  %v69 = vunpack.c.l.b16 %v51
  %v70 = vunpack.c.h.b16 %v51
  %v71 = vunpack.c.l.b16 %v52
  %v72 = vunpack.c.h.b16 %v52
  %v73 = vunpack.c.l.b16 %v53
  %v74 = vunpack.c.h.b16 %v53
  %v75 = vpack.c.b16 %v63, %v61
  %v76 = vpack.c.b16 %v64, %v62
  %v77 = vpack.c.b16 %v67, %v65
  %v78 = vpack.c.b16 %v68, %v66
  %v79 = vpack.c.b16 %v71, %v69
  %v80 = vpack.c.b16 %v72, %v70
  %v81 = vpack.c.b16 %v73, %v73
  %v82 = vpack.c.b16 %v74, %v74
  %v123 = vunpack.c.l.b16 %v15
  %v124 = vunpack.c.l.b16 %v16
  %v125 = vunpack.c.l.b16 %v17
  %v126 = vunpack.c.l.b16 %v18
  %v127 = vunpack.c.l.b16 %v19
  %v128 = vunpack.c.l.b16 %v20
  %v129 = vunpack.c.l.b16 %v21
  %v130 = vunpack.c.l.b16 %v22
  %v131 = vunpack.c.l.b16 %v23
  %v132 = vunpack.c.l.b16 %v24
  %v133 = vunpack.c.l.b16 %v25
  %v134 = vunpack.c.l.b16 %v26
  %v135 = vunpack.c.l.b16 %v27
  %v136 = vunpack.c.l.b16 %v28
  %v137 = vunpack.c.l.b16 %v29
  %v138 = vunpack.c.l.b16 %v30
  %v139 = vunpack.c.l.b16 %v31
  %v140 = vunpack.c.l.b16 %v32
  %v141 = vunpack.c.l.b16 %v33
  %v142 = vunpack.c.l.b16 %v34
  %v143 = vunpack.c.l.b16 %v35
  %v144 = vunpack.c.l.b16 %v36
  %v145 = vunpack.c.l.b16 %v37
  %v146 = vunpack.c.l.b16 %v38
  %v147 = vunpack.c.l.b16 %v39
  %v148 = vunpack.c.l.b16 %v40
  %v149 = vunpack.c.l.b16 %v41
  %v150 = vunpack.c.l.b16 %v42
  %v151 = vunpack.c.l.b16 %v43
  %v152 = vunpack.c.l.b16 %v44
  %v153 = vunpack.c.l.b16 %v45
  %v154 = vunpack.c.l.b16 %v46
  %v155 = vpack.c.b16 %v124, %v123
  %v156 = vpack.c.b16 %v126, %v125
  %v157 = vpack.c.b16 %v128, %v127
  %v158 = vpack.c.b16 %v130, %v129
  %v159 = vpack.c.b16 %v132, %v131
  %v160 = vpack.c.b16 %v134, %v133
  %v161 = vpack.c.b16 %v136, %v135
  %v162 = vpack.c.b16 %v138, %v137
  %v163 = vpack.c.b16 %v140, %v139
  %v164 = vpack.c.b16 %v142, %v141
  %v165 = vpack.c.b16 %v144, %v143
  %v166 = vpack.c.b16 %v146, %v145
  %v167 = vpack.c.b16 %v148, %v147
  %v168 = vpack.c.b16 %v150, %v149
  %v169 = vpack.c.b16 %v152, %v151
  %v170 = vpack.c.b16 %v154, %v153
  %187 = vmatprep.subr.bf16.mxu0 0
  %188 = vmatpush1.bf16.msra.mxu0 %v155
  %189 = vmatprep.subr.bf16.mxu0 0
  %190 = vmatpush1.bf16.msra.mxu0 %v156
  %191 = vmatprep.subr.bf16.mxu0 0
  %192 = vmatpush1.bf16.msra.mxu0 %v157
  %193 = vmatprep.subr.bf16.mxu0 0
  %194 = vmatpush1.bf16.msra.mxu0 %v158
  %195 = vmatprep.subr.bf16.mxu0 0
  %196 = vmatpush1.bf16.msra.mxu0 %v159
  %197 = vmatprep.subr.bf16.mxu0 0
  %198 = vmatpush1.bf16.msra.mxu0 %v160
  %199 = vmatprep.subr.bf16.mxu0 0
  %200 = vmatpush1.bf16.msra.mxu0 %v161
  %201 = vmatprep.subr.bf16.mxu0 0
  %202 = vmatpush1.bf16.msra.mxu0 %v162
  %203 = vmatprep.subr.bf16.mxu0 0
  %204 = vmatpush1.bf16.msra.mxu0 %v163
  %205 = vmatprep.subr.bf16.mxu0 0
  %206 = vmatpush1.bf16.msra.mxu0 %v164
  %207 = vmatprep.subr.bf16.mxu0 0
  %208 = vmatpush1.bf16.msra.mxu0 %v165
  %209 = vmatprep.subr.bf16.mxu0 0
  %210 = vmatpush1.bf16.msra.mxu0 %v166
  %211 = vmatprep.subr.bf16.mxu0 0
  %212 = vmatpush1.bf16.msra.mxu0 %v167
  %213 = vmatprep.subr.bf16.mxu0 0
  %214 = vmatpush1.bf16.msra.mxu0 %v168
  %215 = vmatprep.subr.bf16.mxu0 0
  %216 = vmatpush1.bf16.msra.mxu0 %v169
  %217 = vmatprep.subr.bf16.mxu0 0
  %218 = vmatpush1.bf16.msra.mxu0 %v170
  %219 = vmatprep.mubr.bf16.mxu0 %v76
  %220 = vmatmul.mubr.bf16.gmra.mrb[0].mxu0 %v75
  %v221 = vpop.f32.mrb[0].mxu0
  %v222 = vadd.f32 0.0, %v221
  %v223 = vpop.f32.mrb[0].mxu0
  %v224 = vpop.f32.mrb[0].mxu0
  %v225 = vadd.f32 0.0, %v224
  %v226 = vpop.f32.mrb[0].mxu0
  %227 = vmatprep.mubr.bf16.mxu0 %v78
  %228 = vmatmul.mubr.bf16.gmra.mrb[0].mxu0 %v77
  %v229 = vpop.f32.mrb[0].mxu0
  %v230 = vadd.f32 0.0, %v229
  %v231 = vpop.f32.mrb[0].mxu0
  %v232 = vpop.f32.mrb[0].mxu0
  %v233 = vadd.f32 0.0, %v232
  %v234 = vpop.f32.mrb[0].mxu0
  %235 = vmatprep.mubr.bf16.mxu0 %v80
  %236 = vmatmul.mubr.bf16.gmra.mrb[0].mxu0 %v79
  %v237 = vpop.f32.mrb[0].mxu0
  %v238 = vadd.f32 0.0, %v237
  %v239 = vpop.f32.mrb[0].mxu0
  %v240 = vpop.f32.mrb[0].mxu0
  %v241 = vadd.f32 0.0, %v240
  %v242 = vpop.f32.mrb[0].mxu0
  %243 = vmatprep.mubr.bf16.mxu0 %v82
  %244 = vmatmul.mubr.bf16.gmra.mrb[0].mxu0 %v81
  %v245 = vpop.f32.mrb[0].mxu0
  %v246 = vadd.f32 0.0, %v245
  %v247 = vpop.f32.mrb[0].mxu0
  %v248 = vpop.f32.mrb[0].mxu0
  %v249 = vpop.f32.mrb[0].mxu0
  %250 = vdwg.mxu0
  %s251 = scalar_lea.vmem %s0, 56
  %v252 = vld [vmem:[%s251] sm:$0xff]
  %v253 = vld [vmem:[%s251 + $0x8] sm:$0xff]
  %v254 = vld [vmem:[%s251 + $0x10] sm:$0xff]
  %v255 = vld [vmem:[%s251 + $0x18] sm:$0xff]
  %v256 = vld [vmem:[%s251 + $0x20] sm:$0xff]
  %v257 = vld [vmem:[%s251 + $0x28] sm:$0xff]
  %v258 = vld [vmem:[%s251 + $0x30] sm:$0xff]
  %v266 = vunpack.c.l.b16 %v252
  %v267 = vunpack.c.h.b16 %v252
  %v268 = vunpack.c.l.b16 %v253
  %v269 = vunpack.c.h.b16 %v253
  %v270 = vunpack.c.l.b16 %v254
  %v271 = vunpack.c.h.b16 %v254
  %v272 = vunpack.c.l.b16 %v255
  %v273 = vunpack.c.h.b16 %v255
  %v274 = vunpack.c.l.b16 %v256
  %v275 = vunpack.c.h.b16 %v256
  %v276 = vunpack.c.l.b16 %v257
  %v277 = vunpack.c.h.b16 %v257
  %v278 = vunpack.c.l.b16 %v258
  %v279 = vunpack.c.h.b16 %v258
  %v280 = vpack.c.b16 %v268, %v266
  %v281 = vpack.c.b16 %v269, %v267
  %v282 = vpack.c.b16 %v272, %v270
  %v283 = vpack.c.b16 %v273, %v271
  %v284 = vpack.c.b16 %v276, %v274
  %v285 = vpack.c.b16 %v277, %v275
  %v286 = vpack.c.b16 %v278, %v278
  %v287 = vpack.c.b16 %v279, %v279
  %296 = vmatprep.subr.bf16.mxu0 0
  %297 = vmatpush1.bf16.msra.mxu0 %v155
  %298 = vmatprep.subr.bf16.mxu0 0
  %299 = vmatpush1.bf16.msra.mxu0 %v156
  %300 = vmatprep.subr.bf16.mxu0 0
  %301 = vmatpush1.bf16.msra.mxu0 %v157
  %302 = vmatprep.subr.bf16.mxu0 0
  %303 = vmatpush1.bf16.msra.mxu0 %v158
  %304 = vmatprep.subr.bf16.mxu0 0
  %305 = vmatpush1.bf16.msra.mxu0 %v159
  %306 = vmatprep.subr.bf16.mxu0 0
  %307 = vmatpush1.bf16.msra.mxu0 %v160
  %308 = vmatprep.subr.bf16.mxu0 0
  %309 = vmatpush1.bf16.msra.mxu0 %v161
  %310 = vmatprep.subr.bf16.mxu0 0
  %311 = vmatpush1.bf16.msra.mxu0 %v162
  %312 = vmatprep.subr.bf16.mxu0 0
  %313 = vmatpush1.bf16.msra.mxu0 %v163
  %314 = vmatprep.subr.bf16.mxu0 0
  %315 = vmatpush1.bf16.msra.mxu0 %v164
  %316 = vmatprep.subr.bf16.mxu0 0
  %317 = vmatpush1.bf16.msra.mxu0 %v165
  %318 = vmatprep.subr.bf16.mxu0 0
  %319 = vmatpush1.bf16.msra.mxu0 %v166
  %320 = vmatprep.subr.bf16.mxu0 0
  %321 = vmatpush1.bf16.msra.mxu0 %v167
  %322 = vmatprep.subr.bf16.mxu0 0
  %323 = vmatpush1.bf16.msra.mxu0 %v168
  %324 = vmatprep.subr.bf16.mxu0 0
  %325 = vmatpush1.bf16.msra.mxu0 %v169
  %326 = vmatprep.subr.bf16.mxu0 0
  %327 = vmatpush1.bf16.msra.mxu0 %v170
  %328 = vmatprep.mubr.bf16.mxu0 %v281
  %329 = vmatmul.mubr.bf16.gmra.mrb[0].mxu0 %v280
  %v330 = vpop.f32.mrb[0].mxu0
  %v331 = vadd.f32 0.0, %v330
  %v332 = vpop.f32.mrb[0].mxu0
  %v333 = vpop.f32.mrb[0].mxu0
  %v334 = vadd.f32 0.0, %v333
  %v335 = vpop.f32.mrb[0].mxu0
  %336 = vmatprep.mubr.bf16.mxu0 %v283
  %337 = vmatmul.mubr.bf16.gmra.mrb[0].mxu0 %v282
  %v338 = vpop.f32.mrb[0].mxu0
  %v339 = vadd.f32 0.0, %v338
  %v340 = vpop.f32.mrb[0].mxu0
  %v341 = vpop.f32.mrb[0].mxu0
  %v342 = vadd.f32 0.0, %v341
  %v343 = vpop.f32.mrb[0].mxu0
  %344 = vmatprep.mubr.bf16.mxu0 %v285
  %345 = vmatmul.mubr.bf16.gmra.mrb[0].mxu0 %v284
  %v346 = vpop.f32.mrb[0].mxu0
  %v347 = vadd.f32 0.0, %v346
  %v348 = vpop.f32.mrb[0].mxu0
  %v349 = vpop.f32.mrb[0].mxu0
  %v350 = vadd.f32 0.0, %v349
  %v351 = vpop.f32.mrb[0].mxu0
  %352 = vmatprep.mubr.bf16.mxu0 %v287
  %353 = vmatmul.mubr.bf16.gmra.mrb[0].mxu0 %v286
  %v354 = vpop.f32.mrb[0].mxu0
  %v355 = vadd.f32 0.0, %v354
  %v356 = vpop.f32.mrb[0].mxu0
  %v357 = vpop.f32.mrb[0].mxu0
  %v358 = vpop.f32.mrb[0].mxu0
  %359 = vdwg.mxu0
  %v360 = vmax.f32 %v222, %v331
  %v361 = vmax.f32 %v225, %v334
  %v362 = vmax.f32 %v230, %v339
  %v363 = vmax.f32 %v233, %v342
  %v364 = vmax.f32 %v238, %v347
  %v365 = vmax.f32 %v241, %v350
  %v366 = vmax.f32 %v246, %v355
  %s367 = scalar_lea.vmem %s0, 112
  %v368 = vld [vmem:[%s367] sm:$0xff]
  %v369 = vld [vmem:[%s367 + $0x8] sm:$0xff]
  %v370 = vld [vmem:[%s367 + $0x10] sm:$0xff]
  %v371 = vld [vmem:[%s367 + $0x18] sm:$0xff]
  %v372 = vld [vmem:[%s367 + $0x20] sm:$0xff]
  %v373 = vld [vmem:[%s367 + $0x28] sm:$0xff]
  %v374 = vld [vmem:[%s367 + $0x30] sm:$0xff]
  %v382 = vunpack.c.l.b16 %v368
  %v383 = vunpack.c.h.b16 %v368
  %v384 = vunpack.c.l.b16 %v369
  %v385 = vunpack.c.h.b16 %v369
  %v386 = vunpack.c.l.b16 %v370
  %v387 = vunpack.c.h.b16 %v370
  %v388 = vunpack.c.l.b16 %v371
  %v389 = vunpack.c.h.b16 %v371
  %v390 = vunpack.c.l.b16 %v372
  %v391 = vunpack.c.h.b16 %v372
  %v392 = vunpack.c.l.b16 %v373
  %v393 = vunpack.c.h.b16 %v373
  %v394 = vunpack.c.l.b16 %v374
  %v395 = vunpack.c.h.b16 %v374
  %v396 = vpack.c.b16 %v384, %v382
  %v397 = vpack.c.b16 %v385, %v383
  %v398 = vpack.c.b16 %v388, %v386
  %v399 = vpack.c.b16 %v389, %v387
  %v400 = vpack.c.b16 %v392, %v390
  %v401 = vpack.c.b16 %v393, %v391
  %v402 = vpack.c.b16 %v394, %v394
  %v403 = vpack.c.b16 %v395, %v395
  %412 = vmatprep.subr.bf16.mxu0 0
  %413 = vmatpush1.bf16.msra.mxu0 %v155
  %414 = vmatprep.subr.bf16.mxu0 0
  %415 = vmatpush1.bf16.msra.mxu0 %v156
  %416 = vmatprep.subr.bf16.mxu0 0
  %417 = vmatpush1.bf16.msra.mxu0 %v157
  %418 = vmatprep.subr.bf16.mxu0 0
  %419 = vmatpush1.bf16.msra.mxu0 %v158
  %420 = vmatprep.subr.bf16.mxu0 0
  %421 = vmatpush1.bf16.msra.mxu0 %v159
  %422 = vmatprep.subr.bf16.mxu0 0
  %423 = vmatpush1.bf16.msra.mxu0 %v160
  %424 = vmatprep.subr.bf16.mxu0 0
  %425 = vmatpush1.bf16.msra.mxu0 %v161
  %426 = vmatprep.subr.bf16.mxu0 0
  %427 = vmatpush1.bf16.msra.mxu0 %v162
  %428 = vmatprep.subr.bf16.mxu0 0
  %429 = vmatpush1.bf16.msra.mxu0 %v163
  %430 = vmatprep.subr.bf16.mxu0 0
  %431 = vmatpush1.bf16.msra.mxu0 %v164
  %432 = vmatprep.subr.bf16.mxu0 0
  %433 = vmatpush1.bf16.msra.mxu0 %v165
  %434 = vmatprep.subr.bf16.mxu0 0
  %435 = vmatpush1.bf16.msra.mxu0 %v166
  %436 = vmatprep.subr.bf16.mxu0 0
  %437 = vmatpush1.bf16.msra.mxu0 %v167
  %438 = vmatprep.subr.bf16.mxu0 0
  %439 = vmatpush1.bf16.msra.mxu0 %v168
  %440 = vmatprep.subr.bf16.mxu0 0
  %441 = vmatpush1.bf16.msra.mxu0 %v169
  %442 = vmatprep.subr.bf16.mxu0 0
  %443 = vmatpush1.bf16.msra.mxu0 %v170
  %444 = vmatprep.mubr.bf16.mxu0 %v397
  %445 = vmatmul.mubr.bf16.gmra.mrb[0].mxu0 %v396
  %v446 = vpop.f32.mrb[0].mxu0
  %v447 = vadd.f32 0.0, %v446
  %v448 = vpop.f32.mrb[0].mxu0
  %v449 = vpop.f32.mrb[0].mxu0
  %v450 = vadd.f32 0.0, %v449
  %v451 = vpop.f32.mrb[0].mxu0
  %452 = vmatprep.mubr.bf16.mxu0 %v399
  %453 = vmatmul.mubr.bf16.gmra.mrb[0].mxu0 %v398
  %v454 = vpop.f32.mrb[0].mxu0
  %v455 = vadd.f32 0.0, %v454
  %v456 = vpop.f32.mrb[0].mxu0
  %v457 = vpop.f32.mrb[0].mxu0
  %v458 = vadd.f32 0.0, %v457
  %v459 = vpop.f32.mrb[0].mxu0
  %460 = vmatprep.mubr.bf16.mxu0 %v401
  %461 = vmatmul.mubr.bf16.gmra.mrb[0].mxu0 %v400
  %v462 = vpop.f32.mrb[0].mxu0
  %v463 = vadd.f32 0.0, %v462
  %v464 = vpop.f32.mrb[0].mxu0
  %v465 = vpop.f32.mrb[0].mxu0
  %v466 = vadd.f32 0.0, %v465
  %v467 = vpop.f32.mrb[0].mxu0
  %468 = vmatprep.mubr.bf16.mxu0 %v403
  %469 = vmatmul.mubr.bf16.gmra.mrb[0].mxu0 %v402
  %v470 = vpop.f32.mrb[0].mxu0
  %v471 = vadd.f32 0.0, %v470
  %v472 = vpop.f32.mrb[0].mxu0
  %v473 = vpop.f32.mrb[0].mxu0
  %v474 = vpop.f32.mrb[0].mxu0
  %475 = vdwg.mxu0
  %v476 = vmax.f32 %v360, %v447
  %v477 = vmax.f32 %v361, %v450
  %v478 = vmax.f32 %v362, %v455
  %v479 = vmax.f32 %v363, %v458
  %v480 = vmax.f32 %v364, %v463
  %v481 = vmax.f32 %v365, %v466
  %v482 = vmax.f32 %v366, %v471
  %s483 = scalar_lea.vmem %s0, 168
  %v484 = vld [vmem:[%s483] sm:$0xff]
  %v485 = vld [vmem:[%s483 + $0x8] sm:$0xff]
  %v486 = vld [vmem:[%s483 + $0x10] sm:$0xff]
  %v487 = vld [vmem:[%s483 + $0x18] sm:$0xff]
  %v488 = vld [vmem:[%s483 + $0x20] sm:$0xff]
  %v489 = vld [vmem:[%s483 + $0x28] sm:$0xff]
  %v490 = vld [vmem:[%s483 + $0x30] sm:$0xff]
  %v498 = vunpack.c.l.b16 %v484
  %v499 = vunpack.c.h.b16 %v484
  %v500 = vunpack.c.l.b16 %v485
  %v501 = vunpack.c.h.b16 %v485
  %v502 = vunpack.c.l.b16 %v486
  %v503 = vunpack.c.h.b16 %v486
  %v504 = vunpack.c.l.b16 %v487
  %v505 = vunpack.c.h.b16 %v487
  %v506 = vunpack.c.l.b16 %v488
  %v507 = vunpack.c.h.b16 %v488
  %v508 = vunpack.c.l.b16 %v489
  %v509 = vunpack.c.h.b16 %v489
  %v510 = vunpack.c.l.b16 %v490
  %v511 = vunpack.c.h.b16 %v490
  %v512 = vpack.c.b16 %v500, %v498
  %v513 = vpack.c.b16 %v501, %v499
  %v514 = vpack.c.b16 %v504, %v502
  %v515 = vpack.c.b16 %v505, %v503
  %v516 = vpack.c.b16 %v508, %v506
  %v517 = vpack.c.b16 %v509, %v507
  %v518 = vpack.c.b16 %v510, %v510
  %v519 = vpack.c.b16 %v511, %v511
  %528 = vmatprep.subr.bf16.mxu0 0
  %529 = vmatpush1.bf16.msra.mxu0 %v155
  %530 = vmatprep.subr.bf16.mxu0 0
  %531 = vmatpush1.bf16.msra.mxu0 %v156
  %532 = vmatprep.subr.bf16.mxu0 0
  %533 = vmatpush1.bf16.msra.mxu0 %v157
  %534 = vmatprep.subr.bf16.mxu0 0
  %535 = vmatpush1.bf16.msra.mxu0 %v158
  %536 = vmatprep.subr.bf16.mxu0 0
  %537 = vmatpush1.bf16.msra.mxu0 %v159
  %538 = vmatprep.subr.bf16.mxu0 0
  %539 = vmatpush1.bf16.msra.mxu0 %v160
  %540 = vmatprep.subr.bf16.mxu0 0
  %541 = vmatpush1.bf16.msra.mxu0 %v161
  %542 = vmatprep.subr.bf16.mxu0 0
  %543 = vmatpush1.bf16.msra.mxu0 %v162
  %544 = vmatprep.subr.bf16.mxu0 0
  %545 = vmatpush1.bf16.msra.mxu0 %v163
  %546 = vmatprep.subr.bf16.mxu0 0
  %547 = vmatpush1.bf16.msra.mxu0 %v164
  %548 = vmatprep.subr.bf16.mxu0 0
  %549 = vmatpush1.bf16.msra.mxu0 %v165
  %550 = vmatprep.subr.bf16.mxu0 0
  %551 = vmatpush1.bf16.msra.mxu0 %v166
  %552 = vmatprep.subr.bf16.mxu0 0
  %553 = vmatpush1.bf16.msra.mxu0 %v167
  %554 = vmatprep.subr.bf16.mxu0 0
  %555 = vmatpush1.bf16.msra.mxu0 %v168
  %556 = vmatprep.subr.bf16.mxu0 0
  %557 = vmatpush1.bf16.msra.mxu0 %v169
  %558 = vmatprep.subr.bf16.mxu0 0
  %559 = vmatpush1.bf16.msra.mxu0 %v170
  %560 = vmatprep.mubr.bf16.mxu0 %v513
  %561 = vmatmul.mubr.bf16.gmra.mrb[0].mxu0 %v512
  %v562 = vpop.f32.mrb[0].mxu0
  %v563 = vadd.f32 0.0, %v562
  %v564 = vpop.f32.mrb[0].mxu0
  %v565 = vpop.f32.mrb[0].mxu0
  %v566 = vadd.f32 0.0, %v565
  %v567 = vpop.f32.mrb[0].mxu0
  %568 = vmatprep.mubr.bf16.mxu0 %v515
  %569 = vmatmul.mubr.bf16.gmra.mrb[0].mxu0 %v514
  %v570 = vpop.f32.mrb[0].mxu0
  %v571 = vadd.f32 0.0, %v570
  %v572 = vpop.f32.mrb[0].mxu0
  %v573 = vpop.f32.mrb[0].mxu0
  %v574 = vadd.f32 0.0, %v573
  %v575 = vpop.f32.mrb[0].mxu0
  %576 = vmatprep.mubr.bf16.mxu0 %v517
  %577 = vmatmul.mubr.bf16.gmra.mrb[0].mxu0 %v516
  %v578 = vpop.f32.mrb[0].mxu0
  %v579 = vadd.f32 0.0, %v578
  %v580 = vpop.f32.mrb[0].mxu0
  %v581 = vpop.f32.mrb[0].mxu0
  %v582 = vadd.f32 0.0, %v581
  %v583 = vpop.f32.mrb[0].mxu0
  %584 = vmatprep.mubr.bf16.mxu0 %v519
  %585 = vmatmul.mubr.bf16.gmra.mrb[0].mxu0 %v518
  %v586 = vpop.f32.mrb[0].mxu0
  %v587 = vadd.f32 0.0, %v586
  %v588 = vpop.f32.mrb[0].mxu0
  %v589 = vpop.f32.mrb[0].mxu0
  %v590 = vpop.f32.mrb[0].mxu0
  %591 = vdwg.mxu0
  %v592 = vmax.f32 %v476, %v563
  %v593 = vmax.f32 %v477, %v566
  %v594 = vmax.f32 %v478, %v571
  %v595 = vmax.f32 %v479, %v574
  %v596 = vmax.f32 %v480, %v579
  %v597 = vmax.f32 %v481, %v582
  %v598 = vmax.f32 %v482, %v587
  %v599 = vld [vmem:[%s2] sm:$0x1]
  %v601 = vlaneseq
  %v602 = vshrl.u32 %v601, 7
  %v603 = vsub.s32 0, %v602
  %v604 = vrot.slane %v599, %v603
  %v606 = vadd.f32 %v592, %v604
  %v607 = vadd.f32 %v593, %v604
  %v608 = vadd.f32 %v594, %v604
  %v609 = vadd.f32 %v595, %v604
  %v610 = vadd.f32 %v596, %v604
  %v611 = vadd.f32 %v597, %v604
  %v612 = vadd.f32 %v598, %v604
  %v613 = vmax.f32 %v606, 0.0
  %v614 = vmax.f32 %v607, 0.0
  %v615 = vmax.f32 %v608, 0.0
  %v616 = vmax.f32 %v609, 0.0
  %v617 = vmax.f32 %v610, 0.0
  %v618 = vmax.f32 %v611, 0.0
  %v619 = vmax.f32 %v612, 0.0
  %v620 = vpack.c.bf16 %v614, %v613
  %v621 = vpack.c.bf16 %v616, %v615
  %v622 = vpack.c.bf16 %v618, %v617
  %v623 = vpack.c.bf16 %v619, %v619
  %v628 = vunpack.c.l.b16 %v620
  %v629 = vunpack.c.h.b16 %v620
  %v630 = vunpack.c.l.b16 %v621
  %v631 = vunpack.c.h.b16 %v621
  %v632 = vunpack.c.l.b16 %v622
  %v633 = vunpack.c.h.b16 %v622
  %v634 = vunpack.c.l.b16 %v623
  %v635 = vpack.c.b16 %v628, %v628
  %v636 = vpack.c.b16 %v629, %v629
  %v637 = vpack.c.b16 %v630, %v630
  %v638 = vpack.c.b16 %v631, %v631
  %v639 = vpack.c.b16 %v632, %v632
  %v640 = vpack.c.b16 %v633, %v633
  %v641 = vpack.c.b16 %v634, %v634
  %649 = vst [vmem:[%s3] sm:$0xf] %v635
  %650 = vst [vmem:[%s3 + $0x4] sm:$0xf] %v636
  %651 = vst [vmem:[%s3 + $0x8] sm:$0xf] %v637
  %652 = vst [vmem:[%s3 + $0xc] sm:$0xf] %v638
  %653 = vst [vmem:[%s3 + $0x10] sm:$0xf] %v639
  %654 = vst [vmem:[%s3 + $0x14] sm:$0xf] %v640
  %655 = vst [vmem:[%s3 + $0x18] sm:$0xf] %v641
  // Predicated region
  $region14: #{net_forward.4} parent=0 // pred_check
    _
  $region15: #{net_forward.4} parent=0 // pred_check_branch
    %657 = sbr.rel (0) target = $region17
  $region16: #{net_forward.4} parent=0 // pred_region
    _
  $region17: #{net_forward.4} parent=0 // pred_fallthru
    _
  // Predicated region
  $region18: #{net_forward.4} parent=0 // pred_check
    _
  $region19: #{net_forward.4} parent=0 // pred_check_branch
    %659 = sbr.rel (0) target = $region21
  $region20: #{net_forward.4} parent=0 // pred_region
    _
  $region21: #{net_forward.4} parent=0 // pred_fallthru
    _

// kernel: net_forward.5
$region0: #{net_forward.5}
  #allocation0 [shape = 'u32[]', space=smem, size = 0x4, offset = 0x4, fixed_abs, tag = 'smem constant byte address 0x4 - core index']
  #allocation1 [shape = 'u32[144,128]{1,0:T(1,128)}', space=vmem, size = 0x12000, scoped, tag = 'internal scratch']
  %s0 = inlined_call_operand.vmem [shape: bf16[8,512], index: 0, kind: input, shape index: {}]
  %s1 = inlined_call_operand.vmem [shape: bf16[512,128], index: 1, kind: input, shape index: {}]
  %s2 = inlined_call_operand.vmem [shape: f32[1,128], index: 2, kind: input, shape index: {}]
  %s3 = inlined_call_operand.vmem [shape: bf16[128,128], index: 3, kind: input, shape index: {}]
  %s4 = inlined_call_operand.vmem [shape: f32[1,128], index: 4, kind: input, shape index: {}]
  %s5 = inlined_call_operand.vmem [shape: bf16[128,128], index: 5, kind: input, shape index: {}]
  %s6 = inlined_call_operand.vmem [shape: f32[1,128], index: 6, kind: input, shape index: {}]
  %s7 = inlined_call_operand.vmem [shape: f32[8,128], index: 7, kind: output, shape index: {}]
  %s8 = sld [smem:[#allocation0]]
  $region38: #{net_forward.5} parent=0
    _
  %s10 = ssub.s32 1, %s8
  %s11 = scalar_select 0, %s10, %s8
  // Predicated region
  $region2: #{net_forward.5} parent=0 // pred_check
    _
  $region3: #{net_forward.5} parent=0 // pred_check_branch
    %13 = sbr.rel (0) target = $region5
  $region4: #{net_forward.5} parent=0 // pred_region
    _
  $region5: #{net_forward.5} parent=0 // pred_fallthru
    _
  // Predicated region
  $region6: #{net_forward.5} parent=0 // pred_check
    _
  $region7: #{net_forward.5} parent=0 // pred_check_branch
    %15 = sbr.rel (0) target = $region9
  $region8: #{net_forward.5} parent=0 // pred_region
    _
  $region9: #{net_forward.5} parent=0 // pred_fallthru
    _
  // Predicated region
  $region10: #{net_forward.5} parent=0 // pred_check
    _
  $region11: #{net_forward.5} parent=0 // pred_check_branch
    %17 = sbr.rel (0) target = $region13
  $region12: #{net_forward.5} parent=0 // pred_region
    _
  $region13: #{net_forward.5} parent=0 // pred_fallthru
    _
  // Predicated region
  $region14: #{net_forward.5} parent=0 // pred_check
    _
  $region15: #{net_forward.5} parent=0 // pred_check_branch
    %19 = sbr.rel (0) target = $region17
  $region16: #{net_forward.5} parent=0 // pred_region
    _
  $region17: #{net_forward.5} parent=0 // pred_fallthru
    _
  // Predicated region
  $region18: #{net_forward.5} parent=0 // pred_check
    _
  $region19: #{net_forward.5} parent=0 // pred_check_branch
    %21 = sbr.rel (0) target = $region21
  $region20: #{net_forward.5} parent=0 // pred_region
    _
  $region21: #{net_forward.5} parent=0 // pred_fallthru
    _
  // Predicated region
  $region22: #{net_forward.5} parent=0 // pred_check
    _
  $region23: #{net_forward.5} parent=0 // pred_check_branch
    %23 = sbr.rel (0) target = $region25
  $region24: #{net_forward.5} parent=0 // pred_region
    _
  $region25: #{net_forward.5} parent=0 // pred_fallthru
    _
  // Predicated region
  $region26: #{net_forward.5} parent=0 // pred_check
    _
  $region27: #{net_forward.5} parent=0 // pred_check_branch
    %25 = sbr.rel (0) target = $region29
  $region28: #{net_forward.5} parent=0 // pred_region
    _
  $region29: #{net_forward.5} parent=0 // pred_fallthru
    _
  %v27 = vld [vmem:[%s0] sm:$0xff]
  %v28 = vld [vmem:[%s0 + $0x8] sm:$0xff]
  %v29 = vld [vmem:[%s1] sm:$0xf]
  %v30 = vld [vmem:[%s1 + $0x4] sm:$0xf]
  %v31 = vld [vmem:[%s1 + $0x8] sm:$0xf]
  %v32 = vld [vmem:[%s1 + $0xc] sm:$0xf]
  %v33 = vld [vmem:[%s1 + $0x10] sm:$0xf]
  %v34 = vld [vmem:[%s1 + $0x14] sm:$0xf]
  %v35 = vld [vmem:[%s1 + $0x18] sm:$0xf]
  %v36 = vld [vmem:[%s1 + $0x1c] sm:$0xf]
  %v37 = vld [vmem:[%s1 + $0x20] sm:$0xf]
  %v38 = vld [vmem:[%s1 + $0x24] sm:$0xf]
  %v39 = vld [vmem:[%s1 + $0x28] sm:$0xf]
  %v40 = vld [vmem:[%s1 + $0x2c] sm:$0xf]
  %v41 = vld [vmem:[%s1 + $0x30] sm:$0xf]
  %v42 = vld [vmem:[%s1 + $0x34] sm:$0xf]
  %v43 = vld [vmem:[%s1 + $0x38] sm:$0xf]
  %v44 = vld [vmem:[%s1 + $0x3c] sm:$0xf]
  %v45 = vld [vmem:[%s1 + $0x40] sm:$0xf]
  %v46 = vld [vmem:[%s1 + $0x44] sm:$0xf]
  %v47 = vld [vmem:[%s1 + $0x48] sm:$0xf]
  %v48 = vld [vmem:[%s1 + $0x4c] sm:$0xf]
  %v49 = vld [vmem:[%s1 + $0x50] sm:$0xf]
  %v50 = vld [vmem:[%s1 + $0x54] sm:$0xf]
  %v51 = vld [vmem:[%s1 + $0x58] sm:$0xf]
  %v52 = vld [vmem:[%s1 + $0x5c] sm:$0xf]
  %v53 = vld [vmem:[%s1 + $0x60] sm:$0xf]
  %v54 = vld [vmem:[%s1 + $0x64] sm:$0xf]
  %v55 = vld [vmem:[%s1 + $0x68] sm:$0xf]
  %v56 = vld [vmem:[%s1 + $0x6c] sm:$0xf]
  %v57 = vld [vmem:[%s1 + $0x70] sm:$0xf]
  %v58 = vld [vmem:[%s1 + $0x74] sm:$0xf]
  %v59 = vld [vmem:[%s1 + $0x78] sm:$0xf]
  %v60 = vld [vmem:[%s1 + $0x7c] sm:$0xf]
  %v61 = vld [vmem:[%s1 + $0x80] sm:$0xf]
  %v62 = vld [vmem:[%s1 + $0x84] sm:$0xf]
  %v63 = vld [vmem:[%s1 + $0x88] sm:$0xf]
  %v64 = vld [vmem:[%s1 + $0x8c] sm:$0xf]
  %v65 = vld [vmem:[%s1 + $0x90] sm:$0xf]
  %v66 = vld [vmem:[%s1 + $0x94] sm:$0xf]
  %v67 = vld [vmem:[%s1 + $0x98] sm:$0xf]
  %v68 = vld [vmem:[%s1 + $0x9c] sm:$0xf]
  %v69 = vld [vmem:[%s1 + $0xa0] sm:$0xf]
  %v70 = vld [vmem:[%s1 + $0xa4] sm:$0xf]
  %v71 = vld [vmem:[%s1 + $0xa8] sm:$0xf]
  %v72 = vld [vmem:[%s1 + $0xac] sm:$0xf]
  %v73 = vld [vmem:[%s1 + $0xb0] sm:$0xf]
  %v74 = vld [vmem:[%s1 + $0xb4] sm:$0xf]
  %v75 = vld [vmem:[%s1 + $0xb8] sm:$0xf]
  %v76 = vld [vmem:[%s1 + $0xbc] sm:$0xf]
  %v77 = vld [vmem:[%s1 + $0xc0] sm:$0xf]
  %v78 = vld [vmem:[%s1 + $0xc4] sm:$0xf]
  %v79 = vld [vmem:[%s1 + $0xc8] sm:$0xf]
  %v80 = vld [vmem:[%s1 + $0xcc] sm:$0xf]
  %v81 = vld [vmem:[%s1 + $0xd0] sm:$0xf]
  %v82 = vld [vmem:[%s1 + $0xd4] sm:$0xf]
  %v83 = vld [vmem:[%s1 + $0xd8] sm:$0xf]
  %v84 = vld [vmem:[%s1 + $0xdc] sm:$0xf]
  %v85 = vld [vmem:[%s1 + $0xe0] sm:$0xf]
  %v86 = vld [vmem:[%s1 + $0xe4] sm:$0xf]
  %v87 = vld [vmem:[%s1 + $0xe8] sm:$0xf]
  %v88 = vld [vmem:[%s1 + $0xec] sm:$0xf]
  %v89 = vld [vmem:[%s1 + $0xf0] sm:$0xf]
  %v90 = vld [vmem:[%s1 + $0xf4] sm:$0xf]
  %v91 = vld [vmem:[%s1 + $0xf8] sm:$0xf]
  %v92 = vld [vmem:[%s1 + $0xfc] sm:$0xf]
  %v93 = vld [vmem:[%s2] sm:$0x1]
  %v95 = vlaneseq
  %v96 = vshrl.u32 %v95, 7
  %v97 = vsub.s32 0, %v96
  %v98 = vrot.slane %v93, %v97
  %v102 = vunpack.c.l.b16 %v27
  %v103 = vunpack.c.h.b16 %v27
  %v104 = vunpack.c.l.b16 %v28
  %v105 = vunpack.c.h.b16 %v28
  %v106 = vpack.c.b16 %v102, %v102
  %v107 = vpack.c.b16 %v103, %v103
  %v108 = vpack.c.b16 %v104, %v104
  %v109 = vpack.c.b16 %v105, %v105
  %v178 = vunpack.c.l.b16 %v29
  %v179 = vunpack.c.l.b16 %v30
  %v180 = vunpack.c.l.b16 %v31
  %v181 = vunpack.c.l.b16 %v32
  %v182 = vunpack.c.l.b16 %v33
  %v183 = vunpack.c.l.b16 %v34
  %v184 = vunpack.c.l.b16 %v35
  %v185 = vunpack.c.l.b16 %v36
  %v186 = vunpack.c.l.b16 %v37
  %v187 = vunpack.c.l.b16 %v38
  %v188 = vunpack.c.l.b16 %v39
  %v189 = vunpack.c.l.b16 %v40
  %v190 = vunpack.c.l.b16 %v41
  %v191 = vunpack.c.l.b16 %v42
  %v192 = vunpack.c.l.b16 %v43
  %v193 = vunpack.c.l.b16 %v44
  %v194 = vunpack.c.l.b16 %v45
  %v195 = vunpack.c.l.b16 %v46
  %v196 = vunpack.c.l.b16 %v47
  %v197 = vunpack.c.l.b16 %v48
  %v198 = vunpack.c.l.b16 %v49
  %v199 = vunpack.c.l.b16 %v50
  %v200 = vunpack.c.l.b16 %v51
  %v201 = vunpack.c.l.b16 %v52
  %v202 = vunpack.c.l.b16 %v53
  %v203 = vunpack.c.l.b16 %v54
  %v204 = vunpack.c.l.b16 %v55
  %v205 = vunpack.c.l.b16 %v56
  %v206 = vunpack.c.l.b16 %v57
  %v207 = vunpack.c.l.b16 %v58
  %v208 = vunpack.c.l.b16 %v59
  %v209 = vunpack.c.l.b16 %v60
  %v210 = vunpack.c.l.b16 %v61
  %v211 = vunpack.c.l.b16 %v62
  %v212 = vunpack.c.l.b16 %v63
  %v213 = vunpack.c.l.b16 %v64
  %v214 = vunpack.c.l.b16 %v65
  %v215 = vunpack.c.l.b16 %v66
  %v216 = vunpack.c.l.b16 %v67
  %v217 = vunpack.c.l.b16 %v68
  %v218 = vunpack.c.l.b16 %v69
  %v219 = vunpack.c.l.b16 %v70
  %v220 = vunpack.c.l.b16 %v71
  %v221 = vunpack.c.l.b16 %v72
  %v222 = vunpack.c.l.b16 %v73
  %v223 = vunpack.c.l.b16 %v74
  %v224 = vunpack.c.l.b16 %v75
  %v225 = vunpack.c.l.b16 %v76
  %v226 = vunpack.c.l.b16 %v77
  %v227 = vunpack.c.l.b16 %v78
  %v228 = vunpack.c.l.b16 %v79
  %v229 = vunpack.c.l.b16 %v80
  %v230 = vunpack.c.l.b16 %v81
  %v231 = vunpack.c.l.b16 %v82
  %v232 = vunpack.c.l.b16 %v83
  %v233 = vunpack.c.l.b16 %v84
  %v234 = vunpack.c.l.b16 %v85
  %v235 = vunpack.c.l.b16 %v86
  %v236 = vunpack.c.l.b16 %v87
  %v237 = vunpack.c.l.b16 %v88
  %v238 = vunpack.c.l.b16 %v89
  %v239 = vunpack.c.l.b16 %v90
  %v240 = vunpack.c.l.b16 %v91
  %v241 = vunpack.c.l.b16 %v92
  %v242 = vpack.c.b16 %v179, %v178
  %v243 = vpack.c.b16 %v181, %v180
  %v244 = vpack.c.b16 %v183, %v182
  %v245 = vpack.c.b16 %v185, %v184
  %v246 = vpack.c.b16 %v187, %v186
  %v247 = vpack.c.b16 %v189, %v188
  %v248 = vpack.c.b16 %v191, %v190
  %v249 = vpack.c.b16 %v193, %v192
  %v250 = vpack.c.b16 %v195, %v194
  %v251 = vpack.c.b16 %v197, %v196
  %v252 = vpack.c.b16 %v199, %v198
  %v253 = vpack.c.b16 %v201, %v200
  %v254 = vpack.c.b16 %v203, %v202
  %v255 = vpack.c.b16 %v205, %v204
  %v256 = vpack.c.b16 %v207, %v206
  %v257 = vpack.c.b16 %v209, %v208
  %v258 = vpack.c.b16 %v211, %v210
  %v259 = vpack.c.b16 %v213, %v212
  %v260 = vpack.c.b16 %v215, %v214
  %v261 = vpack.c.b16 %v217, %v216
  %v262 = vpack.c.b16 %v219, %v218
  %v263 = vpack.c.b16 %v221, %v220
  %v264 = vpack.c.b16 %v223, %v222
  %v265 = vpack.c.b16 %v225, %v224
  %v266 = vpack.c.b16 %v227, %v226
  %v267 = vpack.c.b16 %v229, %v228
  %v268 = vpack.c.b16 %v231, %v230
  %v269 = vpack.c.b16 %v233, %v232
  %v270 = vpack.c.b16 %v235, %v234
  %v271 = vpack.c.b16 %v237, %v236
  %v272 = vpack.c.b16 %v239, %v238
  %v273 = vpack.c.b16 %v241, %v240
  %306 = vmatprep.subr.bf16.mxu0 0
  %307 = vmatpush1.bf16.msra.mxu0 %v242
  %308 = vmatprep.subr.bf16.mxu0 0
  %309 = vmatpush1.bf16.msra.mxu0 %v243
  %310 = vmatprep.subr.bf16.mxu0 0
  %311 = vmatpush1.bf16.msra.mxu0 %v244
  %312 = vmatprep.subr.bf16.mxu0 0
  %313 = vmatpush1.bf16.msra.mxu0 %v245
  %314 = vmatprep.subr.bf16.mxu0 0
  %315 = vmatpush1.bf16.msra.mxu0 %v246
  %316 = vmatprep.subr.bf16.mxu0 0
  %317 = vmatpush1.bf16.msra.mxu0 %v247
  %318 = vmatprep.subr.bf16.mxu0 0
  %319 = vmatpush1.bf16.msra.mxu0 %v248
  %320 = vmatprep.subr.bf16.mxu0 0
  %321 = vmatpush1.bf16.msra.mxu0 %v249
  %322 = vmatprep.subr.bf16.mxu0 0
  %323 = vmatpush1.bf16.msra.mxu0 %v250
  %324 = vmatprep.subr.bf16.mxu0 0
  %325 = vmatpush1.bf16.msra.mxu0 %v251
  %326 = vmatprep.subr.bf16.mxu0 0
  %327 = vmatpush1.bf16.msra.mxu0 %v252
  %328 = vmatprep.subr.bf16.mxu0 0
  %329 = vmatpush1.bf16.msra.mxu0 %v253
  %330 = vmatprep.subr.bf16.mxu0 0
  %331 = vmatpush1.bf16.msra.mxu0 %v254
  %332 = vmatprep.subr.bf16.mxu0 0
  %333 = vmatpush1.bf16.msra.mxu0 %v255
  %334 = vmatprep.subr.bf16.mxu0 0
  %335 = vmatpush1.bf16.msra.mxu0 %v256
  %336 = vmatprep.subr.bf16.mxu0 0
  %337 = vmatpush1.bf16.msra.mxu0 %v257
  %338 = vmatprep.mubr.bf16.mxu0 %v107
  %339 = vmatmul.mubr.bf16.gmra.mrb[0].mxu0 %v106
  %v340 = vpop.f32.mrb[0].mxu0
  %v341 = vadd.f32 %v98, %v340
  %v342 = vpop.f32.mrb[0].mxu0
  %v343 = vpop.f32.mrb[0].mxu0
  %v344 = vpop.f32.mrb[0].mxu0
  %345 = vdwg.mxu0
  %346 = vmatprep.subr.bf16.mxu0 0
  %347 = vmatpush1.bf16.msra.mxu0 %v258
  %348 = vmatprep.subr.bf16.mxu0 0
  %349 = vmatpush1.bf16.msra.mxu0 %v259
  %350 = vmatprep.subr.bf16.mxu0 0
  %351 = vmatpush1.bf16.msra.mxu0 %v260
  %352 = vmatprep.subr.bf16.mxu0 0
  %353 = vmatpush1.bf16.msra.mxu0 %v261
  %354 = vmatprep.subr.bf16.mxu0 0
  %355 = vmatpush1.bf16.msra.mxu0 %v262
  %356 = vmatprep.subr.bf16.mxu0 0
  %357 = vmatpush1.bf16.msra.mxu0 %v263
  %358 = vmatprep.subr.bf16.mxu0 0
  %359 = vmatpush1.bf16.msra.mxu0 %v264
  %360 = vmatprep.subr.bf16.mxu0 0
  %361 = vmatpush1.bf16.msra.mxu0 %v265
  %362 = vmatprep.subr.bf16.mxu0 0
  %363 = vmatpush1.bf16.msra.mxu0 %v266
  %364 = vmatprep.subr.bf16.mxu0 0
  %365 = vmatpush1.bf16.msra.mxu0 %v267
  %366 = vmatprep.subr.bf16.mxu0 0
  %367 = vmatpush1.bf16.msra.mxu0 %v268
  %368 = vmatprep.subr.bf16.mxu0 0
  %369 = vmatpush1.bf16.msra.mxu0 %v269
  %370 = vmatprep.subr.bf16.mxu0 0
  %371 = vmatpush1.bf16.msra.mxu0 %v270
  %372 = vmatprep.subr.bf16.mxu0 0
  %373 = vmatpush1.bf16.msra.mxu0 %v271
  %374 = vmatprep.subr.bf16.mxu0 0
  %375 = vmatpush1.bf16.msra.mxu0 %v272
  %376 = vmatprep.subr.bf16.mxu0 0
  %377 = vmatpush1.bf16.msra.mxu0 %v273
  %378 = vmatprep.mubr.bf16.mxu0 %v109
  %379 = vmatmul.mubr.bf16.gmra.mrb[0].mxu0 %v108
  %v380 = vpop.f32.mrb[0].mxu0
  %v381 = vadd.f32 %v341, %v380
  %v382 = vpop.f32.mrb[0].mxu0
  %v383 = vpop.f32.mrb[0].mxu0
  %v384 = vpop.f32.mrb[0].mxu0
  %385 = vdwg.mxu0
  %v386 = vmax.f32 %v381, 0.0
  %v387 = vpack.c.bf16 %v386, %v386
  %v388 = vld [vmem:[%s3] sm:$0xf]
  %v389 = vld [vmem:[%s3 + $0x4] sm:$0xf]
  %v390 = vld [vmem:[%s3 + $0x8] sm:$0xf]
  %v391 = vld [vmem:[%s3 + $0xc] sm:$0xf]
  %v392 = vld [vmem:[%s3 + $0x10] sm:$0xf]
  %v393 = vld [vmem:[%s3 + $0x14] sm:$0xf]
  %v394 = vld [vmem:[%s3 + $0x18] sm:$0xf]
  %v395 = vld [vmem:[%s3 + $0x1c] sm:$0xf]
  %v396 = vld [vmem:[%s3 + $0x20] sm:$0xf]
  %v397 = vld [vmem:[%s3 + $0x24] sm:$0xf]
  %v398 = vld [vmem:[%s3 + $0x28] sm:$0xf]
  %v399 = vld [vmem:[%s3 + $0x2c] sm:$0xf]
  %v400 = vld [vmem:[%s3 + $0x30] sm:$0xf]
  %v401 = vld [vmem:[%s3 + $0x34] sm:$0xf]
  %v402 = vld [vmem:[%s3 + $0x38] sm:$0xf]
  %v403 = vld [vmem:[%s3 + $0x3c] sm:$0xf]
  %v404 = vld [vmem:[%s4] sm:$0x1]
  %v406 = vlaneseq
  %v407 = vshrl.u32 %v406, 7
  %v408 = vsub.s32 0, %v407
  %v409 = vrot.slane %v404, %v408
  %v427 = vunpack.c.l.b16 %v388
  %v428 = vunpack.c.l.b16 %v389
  %v429 = vunpack.c.l.b16 %v390
  %v430 = vunpack.c.l.b16 %v391
  %v431 = vunpack.c.l.b16 %v392
  %v432 = vunpack.c.l.b16 %v393
  %v433 = vunpack.c.l.b16 %v394
  %v434 = vunpack.c.l.b16 %v395
  %v435 = vunpack.c.l.b16 %v396
  %v436 = vunpack.c.l.b16 %v397
  %v437 = vunpack.c.l.b16 %v398
  %v438 = vunpack.c.l.b16 %v399
  %v439 = vunpack.c.l.b16 %v400
  %v440 = vunpack.c.l.b16 %v401
  %v441 = vunpack.c.l.b16 %v402
  %v442 = vunpack.c.l.b16 %v403
  %v443 = vpack.c.b16 %v428, %v427
  %v444 = vpack.c.b16 %v430, %v429
  %v445 = vpack.c.b16 %v432, %v431
  %v446 = vpack.c.b16 %v434, %v433
  %v447 = vpack.c.b16 %v436, %v435
  %v448 = vpack.c.b16 %v438, %v437
  %v449 = vpack.c.b16 %v440, %v439
  %v450 = vpack.c.b16 %v442, %v441
  %459 = vmatprep.subr.bf16.mxu0 0
  %460 = vmatpush1.bf16.msra.mxu0 %v443
  %461 = vmatprep.subr.bf16.mxu0 0
  %462 = vmatpush1.bf16.msra.mxu0 %v444
  %463 = vmatprep.subr.bf16.mxu0 0
  %464 = vmatpush1.bf16.msra.mxu0 %v445
  %465 = vmatprep.subr.bf16.mxu0 0
  %466 = vmatpush1.bf16.msra.mxu0 %v446
  %467 = vmatprep.subr.bf16.mxu0 0
  %468 = vmatpush1.bf16.msra.mxu0 %v447
  %469 = vmatprep.subr.bf16.mxu0 0
  %470 = vmatpush1.bf16.msra.mxu0 %v448
  %471 = vmatprep.subr.bf16.mxu0 0
  %472 = vmatpush1.bf16.msra.mxu0 %v449
  %473 = vmatprep.subr.bf16.mxu0 0
  %474 = vmatpush1.bf16.msra.mxu0 %v450
  %475 = vmatprep.subr.bf16.mxu0 0
  %476 = vmatpush1.bf16.msra.mxu0 0
  %477 = vmatprep.subr.bf16.mxu0 0
  %478 = vmatpush1.bf16.msra.mxu0 0
  %479 = vmatprep.subr.bf16.mxu0 0
  %480 = vmatpush1.bf16.msra.mxu0 0
  %481 = vmatprep.subr.bf16.mxu0 0
  %482 = vmatpush1.bf16.msra.mxu0 0
  %483 = vmatprep.subr.bf16.mxu0 0
  %484 = vmatpush1.bf16.msra.mxu0 0
  %485 = vmatprep.subr.bf16.mxu0 0
  %486 = vmatpush1.bf16.msra.mxu0 0
  %487 = vmatprep.subr.bf16.mxu0 0
  %488 = vmatpush1.bf16.msra.mxu0 0
  %489 = vmatprep.subr.bf16.mxu0 0
  %490 = vmatpush1.bf16.msra.mxu0 0
  %491 = vmatprep.mubr.bf16.mxu0 0
  %492 = vmatmul.mubr.bf16.gmra.mrb[0].mxu0 %v387
  %v493 = vpop.f32.mrb[0].mxu0
  %v494 = vadd.f32 %v409, %v493
  %v495 = vpop.f32.mrb[0].mxu0
  %v496 = vpop.f32.mrb[0].mxu0
  %v497 = vpop.f32.mrb[0].mxu0
  %498 = vdwg.mxu0
  %v499 = vmax.f32 %v494, 0.0
  %v500 = vpack.c.bf16 %v499, %v499
  %v501 = vld [vmem:[%s5] sm:$0xf]
  %v502 = vld [vmem:[%s5 + $0x4] sm:$0xf]
  %v503 = vld [vmem:[%s5 + $0x8] sm:$0xf]
  %v504 = vld [vmem:[%s5 + $0xc] sm:$0xf]
  %v505 = vld [vmem:[%s5 + $0x10] sm:$0xf]
  %v506 = vld [vmem:[%s5 + $0x14] sm:$0xf]
  %v507 = vld [vmem:[%s5 + $0x18] sm:$0xf]
  %v508 = vld [vmem:[%s5 + $0x1c] sm:$0xf]
  %v509 = vld [vmem:[%s5 + $0x20] sm:$0xf]
  %v510 = vld [vmem:[%s5 + $0x24] sm:$0xf]
  %v511 = vld [vmem:[%s5 + $0x28] sm:$0xf]
  %v512 = vld [vmem:[%s5 + $0x2c] sm:$0xf]
  %v513 = vld [vmem:[%s5 + $0x30] sm:$0xf]
  %v514 = vld [vmem:[%s5 + $0x34] sm:$0xf]
  %v515 = vld [vmem:[%s5 + $0x38] sm:$0xf]
  %v516 = vld [vmem:[%s5 + $0x3c] sm:$0xf]
  %v517 = vld [vmem:[%s6] sm:$0x1]
  %v519 = vlaneseq
  %v520 = vshrl.u32 %v519, 7
  %v521 = vsub.s32 0, %v520
  %v522 = vrot.slane %v517, %v521
  %v540 = vunpack.c.l.b16 %v501
  %v541 = vunpack.c.l.b16 %v502
  %v542 = vunpack.c.l.b16 %v503
  %v543 = vunpack.c.l.b16 %v504
  %v544 = vunpack.c.l.b16 %v505
  %v545 = vunpack.c.l.b16 %v506
  %v546 = vunpack.c.l.b16 %v507
  %v547 = vunpack.c.l.b16 %v508
  %v548 = vunpack.c.l.b16 %v509
  %v549 = vunpack.c.l.b16 %v510
  %v550 = vunpack.c.l.b16 %v511
  %v551 = vunpack.c.l.b16 %v512
  %v552 = vunpack.c.l.b16 %v513
  %v553 = vunpack.c.l.b16 %v514
  %v554 = vunpack.c.l.b16 %v515
  %v555 = vunpack.c.l.b16 %v516
  %v556 = vpack.c.b16 %v541, %v540
  %v557 = vpack.c.b16 %v543, %v542
  %v558 = vpack.c.b16 %v545, %v544
  %v559 = vpack.c.b16 %v547, %v546
  %v560 = vpack.c.b16 %v549, %v548
  %v561 = vpack.c.b16 %v551, %v550
  %v562 = vpack.c.b16 %v553, %v552
  %v563 = vpack.c.b16 %v555, %v554
  %572 = vmatprep.subr.bf16.mxu0 0
  %573 = vmatpush1.bf16.msra.mxu0 %v556
  %574 = vmatprep.subr.bf16.mxu0 0
  %575 = vmatpush1.bf16.msra.mxu0 %v557
  %576 = vmatprep.subr.bf16.mxu0 0
  %577 = vmatpush1.bf16.msra.mxu0 %v558
  %578 = vmatprep.subr.bf16.mxu0 0
  %579 = vmatpush1.bf16.msra.mxu0 %v559
  %580 = vmatprep.subr.bf16.mxu0 0
  %581 = vmatpush1.bf16.msra.mxu0 %v560
  %582 = vmatprep.subr.bf16.mxu0 0
  %583 = vmatpush1.bf16.msra.mxu0 %v561
  %584 = vmatprep.subr.bf16.mxu0 0
  %585 = vmatpush1.bf16.msra.mxu0 %v562
  %586 = vmatprep.subr.bf16.mxu0 0
  %587 = vmatpush1.bf16.msra.mxu0 %v563
  %588 = vmatprep.subr.bf16.mxu0 0
  %589 = vmatpush1.bf16.msra.mxu0 0
  %590 = vmatprep.subr.bf16.mxu0 0
  %591 = vmatpush1.bf16.msra.mxu0 0
  %592 = vmatprep.subr.bf16.mxu0 0
  %593 = vmatpush1.bf16.msra.mxu0 0
  %594 = vmatprep.subr.bf16.mxu0 0
  %595 = vmatpush1.bf16.msra.mxu0 0
  %596 = vmatprep.subr.bf16.mxu0 0
  %597 = vmatpush1.bf16.msra.mxu0 0
  %598 = vmatprep.subr.bf16.mxu0 0
  %599 = vmatpush1.bf16.msra.mxu0 0
  %600 = vmatprep.subr.bf16.mxu0 0
  %601 = vmatpush1.bf16.msra.mxu0 0
  %602 = vmatprep.subr.bf16.mxu0 0
  %603 = vmatpush1.bf16.msra.mxu0 0
  %604 = vmatprep.mubr.bf16.mxu0 0
  %605 = vmatmul.mubr.bf16.gmra.mrb[0].mxu0 %v500
  %v606 = vpop.f32.mrb[0].mxu0
  %v607 = vadd.f32 %v522, %v606
  %v608 = vpop.f32.mrb[0].mxu0
  %v609 = vpop.f32.mrb[0].mxu0
  %v610 = vpop.f32.mrb[0].mxu0
  %611 = vdwg.mxu0
  %612 = vst [vmem:[%s7] sm:$0xff] %v607
  // Predicated region
  $region30: #{net_forward.5} parent=0 // pred_check
    _
  $region31: #{net_forward.5} parent=0 // pred_check_branch
    %614 = sbr.rel (0) target = $region33
  $region32: #{net_forward.5} parent=0 // pred_region
    _
  $region33: #{net_forward.5} parent=0 // pred_fallthru
    _
  // Predicated region
  $region34: #{net_forward.5} parent=0 // pred_check
    _
  $region35: #{net_forward.5} parent=0 // pred_check_branch
    %616 = sbr.rel (0) target = $region37
  $region36: #{net_forward.5} parent=0 // pred_region
    _
  $region37: #{net_forward.5} parent=0 // pred_fallthru
    _

</llo_original>
